<compile_context>
chip_gen: v7x
topology: tpu7x:2x2x1
jax: 0.10.0
libtpu: 0.0.40
codegen_flags: <defaults>
</compile_context>

<pallas_src>
import math

import numpy as np
import jax
import jax.numpy as jnp
from jax import lax
from jax.experimental import pallas as pl
from jax.experimental.pallas import tpu as pltpu

D_IN = 5      # [x, y, theta, vx, vy]
D_HID = 64
D_OUT = 256
_CHUNK = 64   # rows per register-resident accumulator chunk


def _round_up(x, m):
    return (x + m - 1) // m * m


def state_process(trajs, current_states):
    """Plain-JAX glue reproducing FutureEncoder.state_process exactly."""
    # trajs: (B, N, M, T, 2); current_states: (B, N, Dc) with Dc >= 2
    B, N, M, T, _ = trajs.shape
    cur_xy = current_states[:, :, None, None, :2]                 # (B,N,1,1,2)
    cur_xy = jnp.broadcast_to(cur_xy, (B, N, M, 1, 2))
    xy = jnp.concatenate([cur_xy, trajs], axis=-2)                # (B,N,M,T+1,2)
    dxy = jnp.diff(xy, axis=-2)                                   # (B,N,M,T,2)
    v = dxy / 0.1
    # torch.clamp(min=0.001) == max(x, 0.001)
    theta = jnp.arctan2(dxy[..., 1], jnp.maximum(dxy[..., 0], 0.001))[..., None]
    feats = jnp.concatenate([trajs, theta, v], axis=-1)           # (B,N,M,T,5)
    return feats


def _future_encoder_kernel(feats_ref, w1_ref, b1_ref, w2_ref, b2_ref, out_ref):
    # feats_ref: (gb, T*5) f32   w1: (5, 64) f32   b1: (1, 64) f32
    # w2: (64, 256) bf16         b2: (1, 256) f32  out: (gb, 256) f32
    gb = out_ref.shape[0]
    T = feats_ref.shape[1] // D_IN
    ch = min(_CHUNK, gb)
    n_chunks = gb // ch          # gb is always a multiple of the chunk size

    # Hoist weight/bias reads (and the bf16 weights) out of the chunk loop.
    w1 = w1_ref[...]                       # (5, 64)   f32
    b1 = b1_ref[...]                       # (1, 64)   f32
    w2 = w2_ref[...]                       # (64, 256) bf16
    b2 = b2_ref[...]                       # (1, 256)  f32

    def chunk_body(c, carry):
        r0 = pl.multiple_of(c * ch, ch)
        f = feats_ref[pl.ds(r0, ch), :]    # (ch, T*5) f32 — one slab load

        def timestep(t):
            base = t * D_IN
            # Layer 1 as 5 VPU broadcast-FMAs: (ch,1)*(1,64) -> (ch,64), f32.
            h = b1 + f[:, base:base + 1] * w1[0:1, :]
            for k in range(1, D_IN):
                h = h + f[:, base + k:base + k + 1] * w1[k:k + 1, :]
            h = jnp.maximum(h, 0.0)        # ReLU
            # Layer 2 on the MXU: bf16 inputs, f32 accumulation.
            return jnp.dot(h.astype(jnp.bfloat16), w2,
                           preferred_element_type=jnp.float32)    # (ch, 256)

        # Register-resident running max over time (no RMW against out_ref).
        acc = timestep(0)
        for t in range(1, T):
            acc = jnp.maximum(acc, timestep(t))
        # Single store per chunk; bias folded into the store.
        out_ref[pl.ds(r0, ch), :] = acc + b2
        return carry

    lax.fori_loop(0, n_chunks, chunk_body, 0)


def future_encoder(trajs, current_states, params, gb=2048):
    """Pallas-accelerated FutureEncoder.forward.

    trajs: (B, N, M, T, 2); current_states: (B, N, Dc>=2)
    params: w1 (5,64), b1 (64,), w2 (64,256), b2 (256,)  (in,out layout)
    gb: requested groups per grid step; rounded to the in-kernel chunk (64),
        clamped to the work available and split so the grid keeps >= ~4 steps
        when there is enough work.
    """
    feats = state_process(trajs, current_states)                  # (B,N,M,T,5)
    B, N, M, T, F = feats.shape
    assert F == D_IN
    G = B * N * M

    # Dense (G, T*5) layout: contiguous reshape, no transpose; the kernel
    # slices feature columns statically (feature k of step t at column t*5+k).
    feats = feats.reshape(G, T * F).astype(jnp.float32)

    # Tile selection — always a multiple of the chunk (hence of 8).
    G_ch = _round_up(G, _CHUNK)
    gb_eff = min(_round_up(max(int(gb), 1), _CHUNK), G_ch)
    min_steps = 4
    if G_ch >= min_steps * _CHUNK:
        max_tile = _round_up(-(-G_ch // min_steps), _CHUNK)
        gb_eff = min(gb_eff, max_tile)
    Gp = _round_up(G, gb_eff)
    if Gp > G:
        feats = jnp.pad(feats, ((0, Gp - G), (0, 0)))

    w1 = params["w1"].astype(jnp.float32)                         # (5, 64)
    b1 = params["b1"].reshape(1, D_HID).astype(jnp.float32)
    w2 = params["w2"].astype(jnp.bfloat16)                        # (64, 256) bf16
    b2 = params["b2"].reshape(1, D_OUT).astype(jnp.float32)

    out = pl.pallas_call(
        _future_encoder_kernel,
        out_shape=jax.ShapeDtypeStruct((Gp, D_OUT), jnp.float32),
        grid_spec=pltpu.PrefetchScalarGridSpec(
            num_scalar_prefetch=0,
            grid=(Gp // gb_eff,),
            in_specs=[
                # (gb, T*5): last dim equals the full array dim, second-to-last
                # is a multiple of 64 -> (8,128) rule satisfied; one contiguous
                # DMA per tile, lane padding only 40->128 in VMEM.
                pl.BlockSpec((gb_eff, T * F), lambda i: (i, 0)),
                # Weights/biases: constant index_map -> resident across steps.
                pl.BlockSpec((D_IN, D_HID), lambda i: (0, 0)),
                pl.BlockSpec((1, D_HID), lambda i: (0, 0)),
                pl.BlockSpec((D_HID, D_OUT), lambda i: (0, 0)),
                pl.BlockSpec((1, D_OUT), lambda i: (0, 0)),
            ],
            out_specs=pl.BlockSpec((gb_eff, D_OUT), lambda i: (i, 0)),
        ),
        compiler_params=pltpu.CompilerParams(
            dimension_semantics=("parallel",)),
    )(feats, w1, b1, w2, b2)

    return out[:G].reshape(B, N, M, D_OUT)


def reference_forward(trajs, current_states, params):
    """Pure-JAX f32 reference matching the PyTorch forward."""
    feats = state_process(trajs, current_states)                  # (B,N,M,T,5)
    h = jnp.maximum(feats @ params["w1"] + params["b1"], 0.0)
    y = h @ params["w2"] + params["b2"]
    return jnp.max(y, axis=-2)                                    # max over T


if __name__ == "__main__":
    key = jax.random.PRNGKey(0)
    _, _, k3, k4, k5, k6 = jax.random.split(key, 6)

    # Deterministic synthetic parameters (nn.Linear stores (out,in); we store
    # the transposed (in,out) layout directly since no checkpoint is loaded).
    params = {
        "w1": jax.random.normal(k3, (D_IN, D_HID), jnp.float32) / math.sqrt(D_IN),
        "b1": jax.random.normal(k4, (D_HID,), jnp.float32) * 0.01,
        "w2": jax.random.normal(k5, (D_HID, D_OUT), jnp.float32) / math.sqrt(D_HID),
        "b2": jax.random.normal(k6, (D_OUT,), jnp.float32) * 0.01,
    }

    cases = [
        # (B, N, M, T, Dc, gb):
        #  - small case exercises group padding (24 -> 64) and grid=1;
        #  - larger case exercises a multi-step grid and the in-kernel
        #    chunk loop (gb_eff=128 -> 2 chunks, grid=3).
        (2, 3, 4, 8, 4, 2048),
        (2, 8, 24, 6, 4, 128),
    ]
    for (B, N, M, T, DC, gb) in cases:
        ka, kb = jax.random.split(jax.random.fold_in(key, B * 1000 + M), 2)
        trajs = jax.random.normal(ka, (B, N, M, T, 2), dtype=jnp.float32)
        current_states = jax.random.normal(kb, (B, N, DC), dtype=jnp.float32)

        ref = np.asarray(reference_forward(trajs, current_states, params))
        out = jax.block_until_ready(
            future_encoder(trajs, current_states, params, gb=gb))
        assert out.shape == (B, N, M, D_OUT), out.shape
        out_np = np.asarray(out)
        # Layer 2 runs in bf16 on the MXU (f32 accumulation), so compare with
        # a scale-relative tolerance instead of the f32 rtol=1e-5.
        err = float(np.max(np.abs(out_np - ref)))
        scale = float(np.max(np.abs(ref))) + 1e-9
        assert err / scale < 2e-2, (B, N, M, T, gb, err, scale)

    print("KERNEL_OK")
</pallas_src>

<mosaic_0001>
module attributes {stable_mosaic.version = 11 : i64} {
  func.func @_future_encoder_kernel(%arg0: i32, %arg1: memref<64x40xf32, #tpu.memory_space<vmem>>, %arg2: memref<5x64xf32, #tpu.memory_space<vmem>>, %arg3: memref<1x64xf32, #tpu.memory_space<vmem>>, %arg4: memref<64x256xbf16, #tpu.memory_space<vmem>>, %arg5: memref<1x256xf32, #tpu.memory_space<vmem>>, %arg6: memref<64x256xf32, #tpu.memory_space<vmem>>) attributes {dimension_semantics = [#tpu.dimension_semantics<parallel>], iteration_bounds = array<i64: 1>, scalar_prefetch = 0 : i64, scratch_operands = 0 : i64, tpu.core_type = #tpu.core_type<tc>, window_params = [{transform_indices = @transform_0, window_bounds = array<i64: 64, 40>}, {pipeline_mode = #tpu.pipeline_mode<synchronous>, transform_indices = @transform_1, window_bounds = array<i64: 5, 64>}, {pipeline_mode = #tpu.pipeline_mode<synchronous>, transform_indices = @transform_2, window_bounds = array<i64: 1, 64>}, {pipeline_mode = #tpu.pipeline_mode<synchronous>, transform_indices = @transform_3, window_bounds = array<i64: 64, 256>}, {pipeline_mode = #tpu.pipeline_mode<synchronous>, transform_indices = @transform_4, window_bounds = array<i64: 1, 256>}, {transform_indices = @transform_5, window_bounds = array<i64: 64, 256>}]} {
    %c0 = arith.constant 0 : index
    %c0_0 = arith.constant 0 : index
    %0 = vector.load %arg2[%c0, %c0_0] : memref<5x64xf32, #tpu.memory_space<vmem>>, vector<5x64xf32>
    %c0_1 = arith.constant 0 : index
    %c0_2 = arith.constant 0 : index
    %1 = vector.load %arg3[%c0_1, %c0_2] : memref<1x64xf32, #tpu.memory_space<vmem>>, vector<1x64xf32>
    %c0_3 = arith.constant 0 : index
    %c0_4 = arith.constant 0 : index
    %2 = vector.load %arg4[%c0_3, %c0_4] : memref<64x256xbf16, #tpu.memory_space<vmem>>, vector<64x256xbf16>
    %c0_5 = arith.constant 0 : index
    %c0_6 = arith.constant 0 : index
    %3 = vector.load %arg5[%c0_5, %c0_6] : memref<1x256xf32, #tpu.memory_space<vmem>>, vector<1x256xf32>
    %c0_i32 = arith.constant 0 : i32
    %c64_i32 = arith.constant 64 : i32
    %4 = arith.muli %c0_i32, %c64_i32 : i32
    %5 = tpu.assume_multiple %4, 64 : i32
    %6 = arith.index_cast %5 : i32 to index
    %c0_7 = arith.constant 0 : index
    %7 = vector.load %arg1[%6, %c0_7] : memref<64x40xf32, #tpu.memory_space<vmem>>, vector<64x40xf32>
    %8 = vector.extract_strided_slice %7 {offsets = [0, 0], sizes = [64, 1], strides = [1, 1]} : vector<64x40xf32> to vector<64x1xf32>
    %9 = vector.extract_strided_slice %0 {offsets = [0, 0], sizes = [1, 64], strides = [1, 1]} : vector<5x64xf32> to vector<1x64xf32>
    %10 = vector.broadcast %8 : vector<64x1xf32> to vector<64x64xf32>
    %11 = vector.broadcast %9 : vector<1x64xf32> to vector<64x64xf32>
    %12 = arith.mulf %10, %11 : vector<64x64xf32>
    %13 = vector.broadcast %1 : vector<1x64xf32> to vector<64x64xf32>
    %14 = arith.addf %13, %12 : vector<64x64xf32>
    %15 = vector.extract_strided_slice %7 {offsets = [0, 1], sizes = [64, 1], strides = [1, 1]} : vector<64x40xf32> to vector<64x1xf32>
    %16 = vector.extract_strided_slice %0 {offsets = [1, 0], sizes = [1, 64], strides = [1, 1]} : vector<5x64xf32> to vector<1x64xf32>
    %17 = vector.broadcast %15 : vector<64x1xf32> to vector<64x64xf32>
    %18 = vector.broadcast %16 : vector<1x64xf32> to vector<64x64xf32>
    %19 = arith.mulf %17, %18 : vector<64x64xf32>
    %20 = arith.addf %14, %19 : vector<64x64xf32>
    %21 = vector.extract_strided_slice %7 {offsets = [0, 2], sizes = [64, 1], strides = [1, 1]} : vector<64x40xf32> to vector<64x1xf32>
    %22 = vector.extract_strided_slice %0 {offsets = [2, 0], sizes = [1, 64], strides = [1, 1]} : vector<5x64xf32> to vector<1x64xf32>
    %23 = vector.broadcast %21 : vector<64x1xf32> to vector<64x64xf32>
    %24 = vector.broadcast %22 : vector<1x64xf32> to vector<64x64xf32>
    %25 = arith.mulf %23, %24 : vector<64x64xf32>
    %26 = arith.addf %20, %25 : vector<64x64xf32>
    %27 = vector.extract_strided_slice %7 {offsets = [0, 3], sizes = [64, 1], strides = [1, 1]} : vector<64x40xf32> to vector<64x1xf32>
    %28 = vector.extract_strided_slice %0 {offsets = [3, 0], sizes = [1, 64], strides = [1, 1]} : vector<5x64xf32> to vector<1x64xf32>
    %29 = vector.broadcast %27 : vector<64x1xf32> to vector<64x64xf32>
    %30 = vector.broadcast %28 : vector<1x64xf32> to vector<64x64xf32>
    %31 = arith.mulf %29, %30 : vector<64x64xf32>
    %32 = arith.addf %26, %31 : vector<64x64xf32>
    %33 = vector.extract_strided_slice %7 {offsets = [0, 4], sizes = [64, 1], strides = [1, 1]} : vector<64x40xf32> to vector<64x1xf32>
    %34 = vector.extract_strided_slice %0 {offsets = [4, 0], sizes = [1, 64], strides = [1, 1]} : vector<5x64xf32> to vector<1x64xf32>
    %35 = vector.broadcast %33 : vector<64x1xf32> to vector<64x64xf32>
    %36 = vector.broadcast %34 : vector<1x64xf32> to vector<64x64xf32>
    %37 = arith.mulf %35, %36 : vector<64x64xf32>
    %38 = arith.addf %32, %37 : vector<64x64xf32>
    %cst = arith.constant 0.000000e+00 : f32
    %39 = vector.broadcast %cst : f32 to vector<64x64xf32>
    %40 = arith.maximumf %38, %39 : vector<64x64xf32>
    %41 = arith.truncf %40 : vector<64x64xf32> to vector<64x64xbf16>
    %cst_8 = arith.constant dense<0.000000e+00> : vector<64x256xf32>
    %42 = tpu.matmul %41, %2, %cst_8 {dimension_numbers = #tpu.dot_dimension_numbers<[1], [0], [0], [1], [0, 0, 1, 1], [], []>} : vector<64x64xbf16>, vector<64x256xbf16>, vector<64x256xf32> -> vector<64x256xf32>
    %43 = vector.extract_strided_slice %7 {offsets = [0, 5], sizes = [64, 1], strides = [1, 1]} : vector<64x40xf32> to vector<64x1xf32>
    %44 = vector.extract_strided_slice %0 {offsets = [0, 0], sizes = [1, 64], strides = [1, 1]} : vector<5x64xf32> to vector<1x64xf32>
    %45 = vector.broadcast %43 : vector<64x1xf32> to vector<64x64xf32>
    %46 = vector.broadcast %44 : vector<1x64xf32> to vector<64x64xf32>
    %47 = arith.mulf %45, %46 : vector<64x64xf32>
    %48 = vector.broadcast %1 : vector<1x64xf32> to vector<64x64xf32>
    %49 = arith.addf %48, %47 : vector<64x64xf32>
    %50 = vector.extract_strided_slice %7 {offsets = [0, 6], sizes = [64, 1], strides = [1, 1]} : vector<64x40xf32> to vector<64x1xf32>
    %51 = vector.extract_strided_slice %0 {offsets = [1, 0], sizes = [1, 64], strides = [1, 1]} : vector<5x64xf32> to vector<1x64xf32>
    %52 = vector.broadcast %50 : vector<64x1xf32> to vector<64x64xf32>
    %53 = vector.broadcast %51 : vector<1x64xf32> to vector<64x64xf32>
    %54 = arith.mulf %52, %53 : vector<64x64xf32>
    %55 = arith.addf %49, %54 : vector<64x64xf32>
    %56 = vector.extract_strided_slice %7 {offsets = [0, 7], sizes = [64, 1], strides = [1, 1]} : vector<64x40xf32> to vector<64x1xf32>
    %57 = vector.extract_strided_slice %0 {offsets = [2, 0], sizes = [1, 64], strides = [1, 1]} : vector<5x64xf32> to vector<1x64xf32>
    %58 = vector.broadcast %56 : vector<64x1xf32> to vector<64x64xf32>
    %59 = vector.broadcast %57 : vector<1x64xf32> to vector<64x64xf32>
    %60 = arith.mulf %58, %59 : vector<64x64xf32>
    %61 = arith.addf %55, %60 : vector<64x64xf32>
    %62 = vector.extract_strided_slice %7 {offsets = [0, 8], sizes = [64, 1], strides = [1, 1]} : vector<64x40xf32> to vector<64x1xf32>
    %63 = vector.extract_strided_slice %0 {offsets = [3, 0], sizes = [1, 64], strides = [1, 1]} : vector<5x64xf32> to vector<1x64xf32>
    %64 = vector.broadcast %62 : vector<64x1xf32> to vector<64x64xf32>
    %65 = vector.broadcast %63 : vector<1x64xf32> to vector<64x64xf32>
    %66 = arith.mulf %64, %65 : vector<64x64xf32>
    %67 = arith.addf %61, %66 : vector<64x64xf32>
    %68 = vector.extract_strided_slice %7 {offsets = [0, 9], sizes = [64, 1], strides = [1, 1]} : vector<64x40xf32> to vector<64x1xf32>
    %69 = vector.extract_strided_slice %0 {offsets = [4, 0], sizes = [1, 64], strides = [1, 1]} : vector<5x64xf32> to vector<1x64xf32>
    %70 = vector.broadcast %68 : vector<64x1xf32> to vector<64x64xf32>
    %71 = vector.broadcast %69 : vector<1x64xf32> to vector<64x64xf32>
    %72 = arith.mulf %70, %71 : vector<64x64xf32>
    %73 = arith.addf %67, %72 : vector<64x64xf32>
    %cst_9 = arith.constant 0.000000e+00 : f32
    %74 = vector.broadcast %cst_9 : f32 to vector<64x64xf32>
    %75 = arith.maximumf %73, %74 : vector<64x64xf32>
    %76 = arith.truncf %75 : vector<64x64xf32> to vector<64x64xbf16>
    %cst_10 = arith.constant dense<0.000000e+00> : vector<64x256xf32>
    %77 = tpu.matmul %76, %2, %cst_10 {dimension_numbers = #tpu.dot_dimension_numbers<[1], [0], [0], [1], [0, 0, 1, 1], [], []>} : vector<64x64xbf16>, vector<64x256xbf16>, vector<64x256xf32> -> vector<64x256xf32>
    %78 = arith.maximumf %42, %77 : vector<64x256xf32>
    %79 = vector.extract_strided_slice %7 {offsets = [0, 10], sizes = [64, 1], strides = [1, 1]} : vector<64x40xf32> to vector<64x1xf32>
    %80 = vector.extract_strided_slice %0 {offsets = [0, 0], sizes = [1, 64], strides = [1, 1]} : vector<5x64xf32> to vector<1x64xf32>
    %81 = vector.broadcast %79 : vector<64x1xf32> to vector<64x64xf32>
    %82 = vector.broadcast %80 : vector<1x64xf32> to vector<64x64xf32>
    %83 = arith.mulf %81, %82 : vector<64x64xf32>
    %84 = vector.broadcast %1 : vector<1x64xf32> to vector<64x64xf32>
    %85 = arith.addf %84, %83 : vector<64x64xf32>
    %86 = vector.extract_strided_slice %7 {offsets = [0, 11], sizes = [64, 1], strides = [1, 1]} : vector<64x40xf32> to vector<64x1xf32>
    %87 = vector.extract_strided_slice %0 {offsets = [1, 0], sizes = [1, 64], strides = [1, 1]} : vector<5x64xf32> to vector<1x64xf32>
    %88 = vector.broadcast %86 : vector<64x1xf32> to vector<64x64xf32>
    %89 = vector.broadcast %87 : vector<1x64xf32> to vector<64x64xf32>
    %90 = arith.mulf %88, %89 : vector<64x64xf32>
    %91 = arith.addf %85, %90 : vector<64x64xf32>
    %92 = vector.extract_strided_slice %7 {offsets = [0, 12], sizes = [64, 1], strides = [1, 1]} : vector<64x40xf32> to vector<64x1xf32>
    %93 = vector.extract_strided_slice %0 {offsets = [2, 0], sizes = [1, 64], strides = [1, 1]} : vector<5x64xf32> to vector<1x64xf32>
    %94 = vector.broadcast %92 : vector<64x1xf32> to vector<64x64xf32>
    %95 = vector.broadcast %93 : vector<1x64xf32> to vector<64x64xf32>
    %96 = arith.mulf %94, %95 : vector<64x64xf32>
    %97 = arith.addf %91, %96 : vector<64x64xf32>
    %98 = vector.extract_strided_slice %7 {offsets = [0, 13], sizes = [64, 1], strides = [1, 1]} : vector<64x40xf32> to vector<64x1xf32>
    %99 = vector.extract_strided_slice %0 {offsets = [3, 0], sizes = [1, 64], strides = [1, 1]} : vector<5x64xf32> to vector<1x64xf32>
    %100 = vector.broadcast %98 : vector<64x1xf32> to vector<64x64xf32>
    %101 = vector.broadcast %99 : vector<1x64xf32> to vector<64x64xf32>
    %102 = arith.mulf %100, %101 : vector<64x64xf32>
    %103 = arith.addf %97, %102 : vector<64x64xf32>
    %104 = vector.extract_strided_slice %7 {offsets = [0, 14], sizes = [64, 1], strides = [1, 1]} : vector<64x40xf32> to vector<64x1xf32>
    %105 = vector.extract_strided_slice %0 {offsets = [4, 0], sizes = [1, 64], strides = [1, 1]} : vector<5x64xf32> to vector<1x64xf32>
    %106 = vector.broadcast %104 : vector<64x1xf32> to vector<64x64xf32>
    %107 = vector.broadcast %105 : vector<1x64xf32> to vector<64x64xf32>
    %108 = arith.mulf %106, %107 : vector<64x64xf32>
    %109 = arith.addf %103, %108 : vector<64x64xf32>
    %cst_11 = arith.constant 0.000000e+00 : f32
    %110 = vector.broadcast %cst_11 : f32 to vector<64x64xf32>
    %111 = arith.maximumf %109, %110 : vector<64x64xf32>
    %112 = arith.truncf %111 : vector<64x64xf32> to vector<64x64xbf16>
    %cst_12 = arith.constant dense<0.000000e+00> : vector<64x256xf32>
    %113 = tpu.matmul %112, %2, %cst_12 {dimension_numbers = #tpu.dot_dimension_numbers<[1], [0], [0], [1], [0, 0, 1, 1], [], []>} : vector<64x64xbf16>, vector<64x256xbf16>, vector<64x256xf32> -> vector<64x256xf32>
    %114 = arith.maximumf %78, %113 : vector<64x256xf32>
    %115 = vector.extract_strided_slice %7 {offsets = [0, 15], sizes = [64, 1], strides = [1, 1]} : vector<64x40xf32> to vector<64x1xf32>
    %116 = vector.extract_strided_slice %0 {offsets = [0, 0], sizes = [1, 64], strides = [1, 1]} : vector<5x64xf32> to vector<1x64xf32>
    %117 = vector.broadcast %115 : vector<64x1xf32> to vector<64x64xf32>
    %118 = vector.broadcast %116 : vector<1x64xf32> to vector<64x64xf32>
    %119 = arith.mulf %117, %118 : vector<64x64xf32>
    %120 = vector.broadcast %1 : vector<1x64xf32> to vector<64x64xf32>
    %121 = arith.addf %120, %119 : vector<64x64xf32>
    %122 = vector.extract_strided_slice %7 {offsets = [0, 16], sizes = [64, 1], strides = [1, 1]} : vector<64x40xf32> to vector<64x1xf32>
    %123 = vector.extract_strided_slice %0 {offsets = [1, 0], sizes = [1, 64], strides = [1, 1]} : vector<5x64xf32> to vector<1x64xf32>
    %124 = vector.broadcast %122 : vector<64x1xf32> to vector<64x64xf32>
    %125 = vector.broadcast %123 : vector<1x64xf32> to vector<64x64xf32>
    %126 = arith.mulf %124, %125 : vector<64x64xf32>
    %127 = arith.addf %121, %126 : vector<64x64xf32>
    %128 = vector.extract_strided_slice %7 {offsets = [0, 17], sizes = [64, 1], strides = [1, 1]} : vector<64x40xf32> to vector<64x1xf32>
    %129 = vector.extract_strided_slice %0 {offsets = [2, 0], sizes = [1, 64], strides = [1, 1]} : vector<5x64xf32> to vector<1x64xf32>
    %130 = vector.broadcast %128 : vector<64x1xf32> to vector<64x64xf32>
    %131 = vector.broadcast %129 : vector<1x64xf32> to vector<64x64xf32>
    %132 = arith.mulf %130, %131 : vector<64x64xf32>
    %133 = arith.addf %127, %132 : vector<64x64xf32>
    %134 = vector.extract_strided_slice %7 {offsets = [0, 18], sizes = [64, 1], strides = [1, 1]} : vector<64x40xf32> to vector<64x1xf32>
    %135 = vector.extract_strided_slice %0 {offsets = [3, 0], sizes = [1, 64], strides = [1, 1]} : vector<5x64xf32> to vector<1x64xf32>
    %136 = vector.broadcast %134 : vector<64x1xf32> to vector<64x64xf32>
    %137 = vector.broadcast %135 : vector<1x64xf32> to vector<64x64xf32>
    %138 = arith.mulf %136, %137 : vector<64x64xf32>
    %139 = arith.addf %133, %138 : vector<64x64xf32>
    %140 = vector.extract_strided_slice %7 {offsets = [0, 19], sizes = [64, 1], strides = [1, 1]} : vector<64x40xf32> to vector<64x1xf32>
    %141 = vector.extract_strided_slice %0 {offsets = [4, 0], sizes = [1, 64], strides = [1, 1]} : vector<5x64xf32> to vector<1x64xf32>
    %142 = vector.broadcast %140 : vector<64x1xf32> to vector<64x64xf32>
    %143 = vector.broadcast %141 : vector<1x64xf32> to vector<64x64xf32>
    %144 = arith.mulf %142, %143 : vector<64x64xf32>
    %145 = arith.addf %139, %144 : vector<64x64xf32>
    %cst_13 = arith.constant 0.000000e+00 : f32
    %146 = vector.broadcast %cst_13 : f32 to vector<64x64xf32>
    %147 = arith.maximumf %145, %146 : vector<64x64xf32>
    %148 = arith.truncf %147 : vector<64x64xf32> to vector<64x64xbf16>
    %cst_14 = arith.constant dense<0.000000e+00> : vector<64x256xf32>
    %149 = tpu.matmul %148, %2, %cst_14 {dimension_numbers = #tpu.dot_dimension_numbers<[1], [0], [0], [1], [0, 0, 1, 1], [], []>} : vector<64x64xbf16>, vector<64x256xbf16>, vector<64x256xf32> -> vector<64x256xf32>
    %150 = arith.maximumf %114, %149 : vector<64x256xf32>
    %151 = vector.extract_strided_slice %7 {offsets = [0, 20], sizes = [64, 1], strides = [1, 1]} : vector<64x40xf32> to vector<64x1xf32>
    %152 = vector.extract_strided_slice %0 {offsets = [0, 0], sizes = [1, 64], strides = [1, 1]} : vector<5x64xf32> to vector<1x64xf32>
    %153 = vector.broadcast %151 : vector<64x1xf32> to vector<64x64xf32>
    %154 = vector.broadcast %152 : vector<1x64xf32> to vector<64x64xf32>
    %155 = arith.mulf %153, %154 : vector<64x64xf32>
    %156 = vector.broadcast %1 : vector<1x64xf32> to vector<64x64xf32>
    %157 = arith.addf %156, %155 : vector<64x64xf32>
    %158 = vector.extract_strided_slice %7 {offsets = [0, 21], sizes = [64, 1], strides = [1, 1]} : vector<64x40xf32> to vector<64x1xf32>
    %159 = vector.extract_strided_slice %0 {offsets = [1, 0], sizes = [1, 64], strides = [1, 1]} : vector<5x64xf32> to vector<1x64xf32>
    %160 = vector.broadcast %158 : vector<64x1xf32> to vector<64x64xf32>
    %161 = vector.broadcast %159 : vector<1x64xf32> to vector<64x64xf32>
    %162 = arith.mulf %160, %161 : vector<64x64xf32>
    %163 = arith.addf %157, %162 : vector<64x64xf32>
    %164 = vector.extract_strided_slice %7 {offsets = [0, 22], sizes = [64, 1], strides = [1, 1]} : vector<64x40xf32> to vector<64x1xf32>
    %165 = vector.extract_strided_slice %0 {offsets = [2, 0], sizes = [1, 64], strides = [1, 1]} : vector<5x64xf32> to vector<1x64xf32>
    %166 = vector.broadcast %164 : vector<64x1xf32> to vector<64x64xf32>
    %167 = vector.broadcast %165 : vector<1x64xf32> to vector<64x64xf32>
    %168 = arith.mulf %166, %167 : vector<64x64xf32>
    %169 = arith.addf %163, %168 : vector<64x64xf32>
    %170 = vector.extract_strided_slice %7 {offsets = [0, 23], sizes = [64, 1], strides = [1, 1]} : vector<64x40xf32> to vector<64x1xf32>
    %171 = vector.extract_strided_slice %0 {offsets = [3, 0], sizes = [1, 64], strides = [1, 1]} : vector<5x64xf32> to vector<1x64xf32>
    %172 = vector.broadcast %170 : vector<64x1xf32> to vector<64x64xf32>
    %173 = vector.broadcast %171 : vector<1x64xf32> to vector<64x64xf32>
    %174 = arith.mulf %172, %173 : vector<64x64xf32>
    %175 = arith.addf %169, %174 : vector<64x64xf32>
    %176 = vector.extract_strided_slice %7 {offsets = [0, 24], sizes = [64, 1], strides = [1, 1]} : vector<64x40xf32> to vector<64x1xf32>
    %177 = vector.extract_strided_slice %0 {offsets = [4, 0], sizes = [1, 64], strides = [1, 1]} : vector<5x64xf32> to vector<1x64xf32>
    %178 = vector.broadcast %176 : vector<64x1xf32> to vector<64x64xf32>
    %179 = vector.broadcast %177 : vector<1x64xf32> to vector<64x64xf32>
    %180 = arith.mulf %178, %179 : vector<64x64xf32>
    %181 = arith.addf %175, %180 : vector<64x64xf32>
    %cst_15 = arith.constant 0.000000e+00 : f32
    %182 = vector.broadcast %cst_15 : f32 to vector<64x64xf32>
    %183 = arith.maximumf %181, %182 : vector<64x64xf32>
    %184 = arith.truncf %183 : vector<64x64xf32> to vector<64x64xbf16>
    %cst_16 = arith.constant dense<0.000000e+00> : vector<64x256xf32>
    %185 = tpu.matmul %184, %2, %cst_16 {dimension_numbers = #tpu.dot_dimension_numbers<[1], [0], [0], [1], [0, 0, 1, 1], [], []>} : vector<64x64xbf16>, vector<64x256xbf16>, vector<64x256xf32> -> vector<64x256xf32>
    %186 = arith.maximumf %150, %185 : vector<64x256xf32>
    %187 = vector.extract_strided_slice %7 {offsets = [0, 25], sizes = [64, 1], strides = [1, 1]} : vector<64x40xf32> to vector<64x1xf32>
    %188 = vector.extract_strided_slice %0 {offsets = [0, 0], sizes = [1, 64], strides = [1, 1]} : vector<5x64xf32> to vector<1x64xf32>
    %189 = vector.broadcast %187 : vector<64x1xf32> to vector<64x64xf32>
    %190 = vector.broadcast %188 : vector<1x64xf32> to vector<64x64xf32>
    %191 = arith.mulf %189, %190 : vector<64x64xf32>
    %192 = vector.broadcast %1 : vector<1x64xf32> to vector<64x64xf32>
    %193 = arith.addf %192, %191 : vector<64x64xf32>
    %194 = vector.extract_strided_slice %7 {offsets = [0, 26], sizes = [64, 1], strides = [1, 1]} : vector<64x40xf32> to vector<64x1xf32>
    %195 = vector.extract_strided_slice %0 {offsets = [1, 0], sizes = [1, 64], strides = [1, 1]} : vector<5x64xf32> to vector<1x64xf32>
    %196 = vector.broadcast %194 : vector<64x1xf32> to vector<64x64xf32>
    %197 = vector.broadcast %195 : vector<1x64xf32> to vector<64x64xf32>
    %198 = arith.mulf %196, %197 : vector<64x64xf32>
    %199 = arith.addf %193, %198 : vector<64x64xf32>
    %200 = vector.extract_strided_slice %7 {offsets = [0, 27], sizes = [64, 1], strides = [1, 1]} : vector<64x40xf32> to vector<64x1xf32>
    %201 = vector.extract_strided_slice %0 {offsets = [2, 0], sizes = [1, 64], strides = [1, 1]} : vector<5x64xf32> to vector<1x64xf32>
    %202 = vector.broadcast %200 : vector<64x1xf32> to vector<64x64xf32>
    %203 = vector.broadcast %201 : vector<1x64xf32> to vector<64x64xf32>
    %204 = arith.mulf %202, %203 : vector<64x64xf32>
    %205 = arith.addf %199, %204 : vector<64x64xf32>
    %206 = vector.extract_strided_slice %7 {offsets = [0, 28], sizes = [64, 1], strides = [1, 1]} : vector<64x40xf32> to vector<64x1xf32>
    %207 = vector.extract_strided_slice %0 {offsets = [3, 0], sizes = [1, 64], strides = [1, 1]} : vector<5x64xf32> to vector<1x64xf32>
    %208 = vector.broadcast %206 : vector<64x1xf32> to vector<64x64xf32>
    %209 = vector.broadcast %207 : vector<1x64xf32> to vector<64x64xf32>
    %210 = arith.mulf %208, %209 : vector<64x64xf32>
    %211 = arith.addf %205, %210 : vector<64x64xf32>
    %212 = vector.extract_strided_slice %7 {offsets = [0, 29], sizes = [64, 1], strides = [1, 1]} : vector<64x40xf32> to vector<64x1xf32>
    %213 = vector.extract_strided_slice %0 {offsets = [4, 0], sizes = [1, 64], strides = [1, 1]} : vector<5x64xf32> to vector<1x64xf32>
    %214 = vector.broadcast %212 : vector<64x1xf32> to vector<64x64xf32>
    %215 = vector.broadcast %213 : vector<1x64xf32> to vector<64x64xf32>
    %216 = arith.mulf %214, %215 : vector<64x64xf32>
    %217 = arith.addf %211, %216 : vector<64x64xf32>
    %cst_17 = arith.constant 0.000000e+00 : f32
    %218 = vector.broadcast %cst_17 : f32 to vector<64x64xf32>
    %219 = arith.maximumf %217, %218 : vector<64x64xf32>
    %220 = arith.truncf %219 : vector<64x64xf32> to vector<64x64xbf16>
    %cst_18 = arith.constant dense<0.000000e+00> : vector<64x256xf32>
    %221 = tpu.matmul %220, %2, %cst_18 {dimension_numbers = #tpu.dot_dimension_numbers<[1], [0], [0], [1], [0, 0, 1, 1], [], []>} : vector<64x64xbf16>, vector<64x256xbf16>, vector<64x256xf32> -> vector<64x256xf32>
    %222 = arith.maximumf %186, %221 : vector<64x256xf32>
    %223 = vector.extract_strided_slice %7 {offsets = [0, 30], sizes = [64, 1], strides = [1, 1]} : vector<64x40xf32> to vector<64x1xf32>
    %224 = vector.extract_strided_slice %0 {offsets = [0, 0], sizes = [1, 64], strides = [1, 1]} : vector<5x64xf32> to vector<1x64xf32>
    %225 = vector.broadcast %223 : vector<64x1xf32> to vector<64x64xf32>
    %226 = vector.broadcast %224 : vector<1x64xf32> to vector<64x64xf32>
    %227 = arith.mulf %225, %226 : vector<64x64xf32>
    %228 = vector.broadcast %1 : vector<1x64xf32> to vector<64x64xf32>
    %229 = arith.addf %228, %227 : vector<64x64xf32>
    %230 = vector.extract_strided_slice %7 {offsets = [0, 31], sizes = [64, 1], strides = [1, 1]} : vector<64x40xf32> to vector<64x1xf32>
    %231 = vector.extract_strided_slice %0 {offsets = [1, 0], sizes = [1, 64], strides = [1, 1]} : vector<5x64xf32> to vector<1x64xf32>
    %232 = vector.broadcast %230 : vector<64x1xf32> to vector<64x64xf32>
    %233 = vector.broadcast %231 : vector<1x64xf32> to vector<64x64xf32>
    %234 = arith.mulf %232, %233 : vector<64x64xf32>
    %235 = arith.addf %229, %234 : vector<64x64xf32>
    %236 = vector.extract_strided_slice %7 {offsets = [0, 32], sizes = [64, 1], strides = [1, 1]} : vector<64x40xf32> to vector<64x1xf32>
    %237 = vector.extract_strided_slice %0 {offsets = [2, 0], sizes = [1, 64], strides = [1, 1]} : vector<5x64xf32> to vector<1x64xf32>
    %238 = vector.broadcast %236 : vector<64x1xf32> to vector<64x64xf32>
    %239 = vector.broadcast %237 : vector<1x64xf32> to vector<64x64xf32>
    %240 = arith.mulf %238, %239 : vector<64x64xf32>
    %241 = arith.addf %235, %240 : vector<64x64xf32>
    %242 = vector.extract_strided_slice %7 {offsets = [0, 33], sizes = [64, 1], strides = [1, 1]} : vector<64x40xf32> to vector<64x1xf32>
    %243 = vector.extract_strided_slice %0 {offsets = [3, 0], sizes = [1, 64], strides = [1, 1]} : vector<5x64xf32> to vector<1x64xf32>
    %244 = vector.broadcast %242 : vector<64x1xf32> to vector<64x64xf32>
    %245 = vector.broadcast %243 : vector<1x64xf32> to vector<64x64xf32>
    %246 = arith.mulf %244, %245 : vector<64x64xf32>
    %247 = arith.addf %241, %246 : vector<64x64xf32>
    %248 = vector.extract_strided_slice %7 {offsets = [0, 34], sizes = [64, 1], strides = [1, 1]} : vector<64x40xf32> to vector<64x1xf32>
    %249 = vector.extract_strided_slice %0 {offsets = [4, 0], sizes = [1, 64], strides = [1, 1]} : vector<5x64xf32> to vector<1x64xf32>
    %250 = vector.broadcast %248 : vector<64x1xf32> to vector<64x64xf32>
    %251 = vector.broadcast %249 : vector<1x64xf32> to vector<64x64xf32>
    %252 = arith.mulf %250, %251 : vector<64x64xf32>
    %253 = arith.addf %247, %252 : vector<64x64xf32>
    %cst_19 = arith.constant 0.000000e+00 : f32
    %254 = vector.broadcast %cst_19 : f32 to vector<64x64xf32>
    %255 = arith.maximumf %253, %254 : vector<64x64xf32>
    %256 = arith.truncf %255 : vector<64x64xf32> to vector<64x64xbf16>
    %cst_20 = arith.constant dense<0.000000e+00> : vector<64x256xf32>
    %257 = tpu.matmul %256, %2, %cst_20 {dimension_numbers = #tpu.dot_dimension_numbers<[1], [0], [0], [1], [0, 0, 1, 1], [], []>} : vector<64x64xbf16>, vector<64x256xbf16>, vector<64x256xf32> -> vector<64x256xf32>
    %258 = arith.maximumf %222, %257 : vector<64x256xf32>
    %259 = vector.extract_strided_slice %7 {offsets = [0, 35], sizes = [64, 1], strides = [1, 1]} : vector<64x40xf32> to vector<64x1xf32>
    %260 = vector.extract_strided_slice %0 {offsets = [0, 0], sizes = [1, 64], strides = [1, 1]} : vector<5x64xf32> to vector<1x64xf32>
    %261 = vector.broadcast %259 : vector<64x1xf32> to vector<64x64xf32>
    %262 = vector.broadcast %260 : vector<1x64xf32> to vector<64x64xf32>
    %263 = arith.mulf %261, %262 : vector<64x64xf32>
    %264 = vector.broadcast %1 : vector<1x64xf32> to vector<64x64xf32>
    %265 = arith.addf %264, %263 : vector<64x64xf32>
    %266 = vector.extract_strided_slice %7 {offsets = [0, 36], sizes = [64, 1], strides = [1, 1]} : vector<64x40xf32> to vector<64x1xf32>
    %267 = vector.extract_strided_slice %0 {offsets = [1, 0], sizes = [1, 64], strides = [1, 1]} : vector<5x64xf32> to vector<1x64xf32>
    %268 = vector.broadcast %266 : vector<64x1xf32> to vector<64x64xf32>
    %269 = vector.broadcast %267 : vector<1x64xf32> to vector<64x64xf32>
    %270 = arith.mulf %268, %269 : vector<64x64xf32>
    %271 = arith.addf %265, %270 : vector<64x64xf32>
    %272 = vector.extract_strided_slice %7 {offsets = [0, 37], sizes = [64, 1], strides = [1, 1]} : vector<64x40xf32> to vector<64x1xf32>
    %273 = vector.extract_strided_slice %0 {offsets = [2, 0], sizes = [1, 64], strides = [1, 1]} : vector<5x64xf32> to vector<1x64xf32>
    %274 = vector.broadcast %272 : vector<64x1xf32> to vector<64x64xf32>
    %275 = vector.broadcast %273 : vector<1x64xf32> to vector<64x64xf32>
    %276 = arith.mulf %274, %275 : vector<64x64xf32>
    %277 = arith.addf %271, %276 : vector<64x64xf32>
    %278 = vector.extract_strided_slice %7 {offsets = [0, 38], sizes = [64, 1], strides = [1, 1]} : vector<64x40xf32> to vector<64x1xf32>
    %279 = vector.extract_strided_slice %0 {offsets = [3, 0], sizes = [1, 64], strides = [1, 1]} : vector<5x64xf32> to vector<1x64xf32>
    %280 = vector.broadcast %278 : vector<64x1xf32> to vector<64x64xf32>
    %281 = vector.broadcast %279 : vector<1x64xf32> to vector<64x64xf32>
    %282 = arith.mulf %280, %281 : vector<64x64xf32>
    %283 = arith.addf %277, %282 : vector<64x64xf32>
    %284 = vector.extract_strided_slice %7 {offsets = [0, 39], sizes = [64, 1], strides = [1, 1]} : vector<64x40xf32> to vector<64x1xf32>
    %285 = vector.extract_strided_slice %0 {offsets = [4, 0], sizes = [1, 64], strides = [1, 1]} : vector<5x64xf32> to vector<1x64xf32>
    %286 = vector.broadcast %284 : vector<64x1xf32> to vector<64x64xf32>
    %287 = vector.broadcast %285 : vector<1x64xf32> to vector<64x64xf32>
    %288 = arith.mulf %286, %287 : vector<64x64xf32>
    %289 = arith.addf %283, %288 : vector<64x64xf32>
    %cst_21 = arith.constant 0.000000e+00 : f32
    %290 = vector.broadcast %cst_21 : f32 to vector<64x64xf32>
    %291 = arith.maximumf %289, %290 : vector<64x64xf32>
    %292 = arith.truncf %291 : vector<64x64xf32> to vector<64x64xbf16>
    %cst_22 = arith.constant dense<0.000000e+00> : vector<64x256xf32>
    %293 = tpu.matmul %292, %2, %cst_22 {dimension_numbers = #tpu.dot_dimension_numbers<[1], [0], [0], [1], [0, 0, 1, 1], [], []>} : vector<64x64xbf16>, vector<64x256xbf16>, vector<64x256xf32> -> vector<64x256xf32>
    %294 = arith.maximumf %258, %293 : vector<64x256xf32>
    %295 = vector.broadcast %3 : vector<1x256xf32> to vector<64x256xf32>
    %296 = arith.addf %294, %295 : vector<64x256xf32>
    %297 = arith.index_cast %5 : i32 to index
    %c0_23 = arith.constant 0 : index
    %298 = vector.load %arg6[%297, %c0_23] : memref<64x256xf32, #tpu.memory_space<vmem>>, vector<64x256xf32>
    tpu.vector_store %arg6[%297, %c0_23], %296 {strides = array<i32>} : memref<64x256xf32, #tpu.memory_space<vmem>>, vector<64x256xf32>,
    %c1_i32 = arith.constant 1 : i32
    return
  }
  func.func @transform_0(%arg0: i32) -> (i32, i32) {
    %c0_i32 = arith.constant 0 : i32
    %c0_i32_0 = arith.constant 0 : i32
    return %arg0, %c0_i32 : i32, i32
  }
  func.func @transform_1(%arg0: i32) -> (i32, i32) {
    %c0_i32 = arith.constant 0 : i32
    %c0_i32_0 = arith.constant 0 : i32
    %c0_i32_1 = arith.constant 0 : i32
    return %c0_i32, %c0_i32_0 : i32, i32
  }
  func.func @transform_2(%arg0: i32) -> (i32, i32) {
    %c0_i32 = arith.constant 0 : i32
    %c0_i32_0 = arith.constant 0 : i32
    %c0_i32_1 = arith.constant 0 : i32
    return %c0_i32, %c0_i32_0 : i32, i32
  }
  func.func @transform_3(%arg0: i32) -> (i32, i32) {
    %c0_i32 = arith.constant 0 : i32
    %c0_i32_0 = arith.constant 0 : i32
    %c0_i32_1 = arith.constant 0 : i32
    return %c0_i32, %c0_i32_0 : i32, i32
  }
  func.func @transform_4(%arg0: i32) -> (i32, i32) {
    %c0_i32 = arith.constant 0 : i32
    %c0_i32_0 = arith.constant 0 : i32
    %c0_i32_1 = arith.constant 0 : i32
    return %c0_i32, %c0_i32_0 : i32, i32
  }
  func.func @transform_5(%arg0: i32) -> (i32, i32) {
    %c0_i32 = arith.constant 0 : i32
    %c0_i32_0 = arith.constant 0 : i32
    return %arg0, %c0_i32 : i32, i32
  }
}

</mosaic_0001>

<llo_original>
// kernel: tpu_custom_call.1
$region0: #{tpu_custom_call.1}
  #allocation0 [shape = 'u32[]', space=smem, size = 0x4, offset = 0x4, fixed_abs, tag = 'smem constant byte address 0x4 - core index']
  #allocation1 [shape = 'u32[144,128]{1,0:T(1,128)}', space=vmem, size = 0x12000, scoped, tag = 'internal scratch']
  %s0 = inlined_call_operand.vmem [shape: f32[64,40], index: 0, kind: input, shape index: {}]
  %s1 = inlined_call_operand.vmem [shape: f32[5,64], index: 1, kind: input, shape index: {}]
  %s2 = inlined_call_operand.vmem [shape: f32[1,64], index: 2, kind: input, shape index: {}]
  %s3 = inlined_call_operand.vmem [shape: bf16[64,256], index: 3, kind: input, shape index: {}]
  %s4 = inlined_call_operand.vmem [shape: f32[1,256], index: 4, kind: input, shape index: {}]
  %s5 = inlined_call_operand.hbm [shape: f32[64,256], index: 5, kind: output, shape index: {}]
  %s6 = sld [smem:[#allocation0]]
  $region30: #{tpu_custom_call.1} parent=0
    _
  %s8 = ssub.s32 1, %s6
  %s9 = scalar_select 0, %s8, %s6
  $region1: #{tpu_custom_call.1} parent=0
    #allocation2 [shape = 'u8[65536]{0}', space=vmem, size = 0x10000, scoped, tag = 'output window, operand 0, single buffered']
    #allocation3 [shape = 's32[1]{0}', space=sflag, size = 0x4, scoped, tag = 'scoped memory for tpu_custom_call.1']
    %10 = vsyncpa [#allocation3], 0
    // Predicated region
    $region2: #{tpu_custom_call.1} parent=1 // pred_check
      _
    $region3: #{tpu_custom_call.1} parent=1 // pred_check_branch
      %12 = sbr.rel (0) target = $region5
    $region4: #{tpu_custom_call.1} parent=1 // pred_region
      _
    $region5: #{tpu_custom_call.1} parent=1 // pred_fallthru
      _
    // Predicated region
    $region6: #{tpu_custom_call.1} parent=1 // pred_check
      _
    $region7: #{tpu_custom_call.1} parent=1 // pred_check_branch
      %14 = sbr.rel (0) target = $region9
    $region8: #{tpu_custom_call.1} parent=1 // pred_region
      _
    $region9: #{tpu_custom_call.1} parent=1 // pred_fallthru
      _
    // Predicated region
    $region10: #{tpu_custom_call.1} parent=1 // pred_check
      _
    $region11: #{tpu_custom_call.1} parent=1 // pred_check_branch
      %16 = sbr.rel (0) target = $region13
    $region12: #{tpu_custom_call.1} parent=1 // pred_region
      _
    $region13: #{tpu_custom_call.1} parent=1 // pred_fallthru
      _
    // Predicated region
    $region14: #{tpu_custom_call.1} parent=1 // pred_check
      _
    $region15: #{tpu_custom_call.1} parent=1 // pred_check_branch
      %18 = sbr.rel (0) target = $region17
    $region16: #{tpu_custom_call.1} parent=1 // pred_region
      _
    $region17: #{tpu_custom_call.1} parent=1 // pred_fallthru
      _
    // Predicated region
    $region18: #{tpu_custom_call.1} parent=1 // pred_check
      _
    $region19: #{tpu_custom_call.1} parent=1 // pred_check_branch
      %20 = sbr.rel (0) target = $region21
    $region20: #{tpu_custom_call.1} parent=1 // pred_region
      _
    $region21: #{tpu_custom_call.1} parent=1 // pred_fallthru
      _
    %v22 = vld [vmem:[%s1] sm:$0x1f]
    %v23 = vld [vmem:[%s2] sm:$0x1]
    %v24 = vld [vmem:[%s3] sm:$0xff]
    %v25 = vld [vmem:[%s3 + $0x8] sm:$0xff]
    %v26 = vld [vmem:[%s3 + $0x10] sm:$0xff]
    %v27 = vld [vmem:[%s3 + $0x18] sm:$0xff]
    %v28 = vld [vmem:[%s3 + $0x20] sm:$0xff]
    %v29 = vld [vmem:[%s3 + $0x28] sm:$0xff]
    %v30 = vld [vmem:[%s3 + $0x30] sm:$0xff]
    %v31 = vld [vmem:[%s3 + $0x38] sm:$0xff]
    %v32 = vld [vmem:[%s4] sm:$0x3]
    %v33 = vld [vmem:[%s0] sm:$0xff]
    %v34 = vld [vmem:[%s0 + $0x8] sm:$0xff]
    %v35 = vld [vmem:[%s0 + $0x10] sm:$0xff]
    %v36 = vld [vmem:[%s0 + $0x18] sm:$0xff]
    %v37 = vld [vmem:[%s0 + $0x20] sm:$0xff]
    %v38 = vld [vmem:[%s0 + $0x28] sm:$0xff]
    %v39 = vld [vmem:[%s0 + $0x30] sm:$0xff]
    %v40 = vld [vmem:[%s0 + $0x38] sm:$0xff]
    %42 = vset.pattern.permute.xlu0 0
    %43 = vperm.xlu0 %42, %v33
    %v44 = vpop.permute.xlu0 %43
    %47 = vset.pattern.permute.xlu0 0
    %48 = vperm.xlu0 %47, %v34
    %v49 = vpop.permute.xlu0 %48
    %52 = vset.pattern.permute.xlu0 0
    %53 = vperm.xlu0 %52, %v35
    %v54 = vpop.permute.xlu0 %53
    %57 = vset.pattern.permute.xlu0 0
    %58 = vperm.xlu0 %57, %v36
    %v59 = vpop.permute.xlu0 %58
    %62 = vset.pattern.permute.xlu0 0
    %63 = vperm.xlu0 %62, %v37
    %v64 = vpop.permute.xlu0 %63
    %67 = vset.pattern.permute.xlu0 0
    %68 = vperm.xlu0 %67, %v38
    %v69 = vpop.permute.xlu0 %68
    %72 = vset.pattern.permute.xlu0 0
    %73 = vperm.xlu0 %72, %v39
    %v74 = vpop.permute.xlu0 %73
    %77 = vset.pattern.permute.xlu0 0
    %78 = vperm.xlu0 %77, %v40
    %v79 = vpop.permute.xlu0 %78
    %v81 = vlaneseq
    %v82 = vshrl.u32 %v81, 7
    %v83 = vsub.s32 0, %v82
    %v84 = vrot.slane %v22, %v83
    %v85 = vmul.f32 %v44, %v84
    %v86 = vmul.f32 %v49, %v84
    %v87 = vmul.f32 %v54, %v84
    %v88 = vmul.f32 %v59, %v84
    %v89 = vmul.f32 %v64, %v84
    %v90 = vmul.f32 %v69, %v84
    %v91 = vmul.f32 %v74, %v84
    %v92 = vmul.f32 %v79, %v84
    %v94 = vlaneseq
    %v95 = vshrl.u32 %v94, 7
    %v96 = vsub.s32 0, %v95
    %v97 = vrot.slane %v23, %v96
    %v99 = vadd.f32 %v97, %v85
    %v100 = vadd.f32 %v97, %v86
    %v101 = vadd.f32 %v97, %v87
    %v102 = vadd.f32 %v97, %v88
    %v103 = vadd.f32 %v97, %v89
    %v104 = vadd.f32 %v97, %v90
    %v105 = vadd.f32 %v97, %v91
    %v106 = vadd.f32 %v97, %v92
    %107 = vset.pattern.permute.xlu0 1
    %108 = vperm.xlu0 %107, %v33
    %v109 = vpop.permute.xlu0 %108
    %111 = vset.pattern.permute.xlu0 1
    %112 = vperm.xlu0 %111, %v34
    %v113 = vpop.permute.xlu0 %112
    %115 = vset.pattern.permute.xlu0 1
    %116 = vperm.xlu0 %115, %v35
    %v117 = vpop.permute.xlu0 %116
    %119 = vset.pattern.permute.xlu0 1
    %120 = vperm.xlu0 %119, %v36
    %v121 = vpop.permute.xlu0 %120
    %123 = vset.pattern.permute.xlu0 1
    %124 = vperm.xlu0 %123, %v37
    %v125 = vpop.permute.xlu0 %124
    %127 = vset.pattern.permute.xlu0 1
    %128 = vperm.xlu0 %127, %v38
    %v129 = vpop.permute.xlu0 %128
    %131 = vset.pattern.permute.xlu0 1
    %132 = vperm.xlu0 %131, %v39
    %v133 = vpop.permute.xlu0 %132
    %135 = vset.pattern.permute.xlu0 1
    %136 = vperm.xlu0 %135, %v40
    %v137 = vpop.permute.xlu0 %136
    %v139 = vlaneseq
    %v140 = vshrl.u32 %v139, 7
    %v141 = vsub.s32 1, %v140
    %v142 = vrot.slane %v22, %v141
    %v143 = vmul.f32 %v109, %v142
    %v144 = vmul.f32 %v113, %v142
    %v145 = vmul.f32 %v117, %v142
    %v146 = vmul.f32 %v121, %v142
    %v147 = vmul.f32 %v125, %v142
    %v148 = vmul.f32 %v129, %v142
    %v149 = vmul.f32 %v133, %v142
    %v150 = vmul.f32 %v137, %v142
    %v151 = vadd.f32 %v99, %v143
    %v152 = vadd.f32 %v100, %v144
    %v153 = vadd.f32 %v101, %v145
    %v154 = vadd.f32 %v102, %v146
    %v155 = vadd.f32 %v103, %v147
    %v156 = vadd.f32 %v104, %v148
    %v157 = vadd.f32 %v105, %v149
    %v158 = vadd.f32 %v106, %v150
    %159 = vset.pattern.permute.xlu0 2
    %160 = vperm.xlu0 %159, %v33
    %v161 = vpop.permute.xlu0 %160
    %163 = vset.pattern.permute.xlu0 2
    %164 = vperm.xlu0 %163, %v34
    %v165 = vpop.permute.xlu0 %164
    %167 = vset.pattern.permute.xlu0 2
    %168 = vperm.xlu0 %167, %v35
    %v169 = vpop.permute.xlu0 %168
    %171 = vset.pattern.permute.xlu0 2
    %172 = vperm.xlu0 %171, %v36
    %v173 = vpop.permute.xlu0 %172
    %175 = vset.pattern.permute.xlu0 2
    %176 = vperm.xlu0 %175, %v37
    %v177 = vpop.permute.xlu0 %176
    %179 = vset.pattern.permute.xlu0 2
    %180 = vperm.xlu0 %179, %v38
    %v181 = vpop.permute.xlu0 %180
    %183 = vset.pattern.permute.xlu0 2
    %184 = vperm.xlu0 %183, %v39
    %v185 = vpop.permute.xlu0 %184
    %187 = vset.pattern.permute.xlu0 2
    %188 = vperm.xlu0 %187, %v40
    %v189 = vpop.permute.xlu0 %188
    %v191 = vlaneseq
    %v192 = vshrl.u32 %v191, 7
    %v193 = vsub.s32 2, %v192
    %v194 = vrot.slane %v22, %v193
    %v195 = vmul.f32 %v161, %v194
    %v196 = vmul.f32 %v165, %v194
    %v197 = vmul.f32 %v169, %v194
    %v198 = vmul.f32 %v173, %v194
    %v199 = vmul.f32 %v177, %v194
    %v200 = vmul.f32 %v181, %v194
    %v201 = vmul.f32 %v185, %v194
    %v202 = vmul.f32 %v189, %v194
    %v203 = vadd.f32 %v151, %v195
    %v204 = vadd.f32 %v152, %v196
    %v205 = vadd.f32 %v153, %v197
    %v206 = vadd.f32 %v154, %v198
    %v207 = vadd.f32 %v155, %v199
    %v208 = vadd.f32 %v156, %v200
    %v209 = vadd.f32 %v157, %v201
    %v210 = vadd.f32 %v158, %v202
    %211 = vset.pattern.permute.xlu0 3
    %212 = vperm.xlu0 %211, %v33
    %v213 = vpop.permute.xlu0 %212
    %215 = vset.pattern.permute.xlu0 3
    %216 = vperm.xlu0 %215, %v34
    %v217 = vpop.permute.xlu0 %216
    %219 = vset.pattern.permute.xlu0 3
    %220 = vperm.xlu0 %219, %v35
    %v221 = vpop.permute.xlu0 %220
    %223 = vset.pattern.permute.xlu0 3
    %224 = vperm.xlu0 %223, %v36
    %v225 = vpop.permute.xlu0 %224
    %227 = vset.pattern.permute.xlu0 3
    %228 = vperm.xlu0 %227, %v37
    %v229 = vpop.permute.xlu0 %228
    %231 = vset.pattern.permute.xlu0 3
    %232 = vperm.xlu0 %231, %v38
    %v233 = vpop.permute.xlu0 %232
    %235 = vset.pattern.permute.xlu0 3
    %236 = vperm.xlu0 %235, %v39
    %v237 = vpop.permute.xlu0 %236
    %239 = vset.pattern.permute.xlu0 3
    %240 = vperm.xlu0 %239, %v40
    %v241 = vpop.permute.xlu0 %240
    %v243 = vlaneseq
    %v244 = vshrl.u32 %v243, 7
    %v245 = vsub.s32 3, %v244
    %v246 = vrot.slane %v22, %v245
    %v247 = vmul.f32 %v213, %v246
    %v248 = vmul.f32 %v217, %v246
    %v249 = vmul.f32 %v221, %v246
    %v250 = vmul.f32 %v225, %v246
    %v251 = vmul.f32 %v229, %v246
    %v252 = vmul.f32 %v233, %v246
    %v253 = vmul.f32 %v237, %v246
    %v254 = vmul.f32 %v241, %v246
    %v255 = vadd.f32 %v203, %v247
    %v256 = vadd.f32 %v204, %v248
    %v257 = vadd.f32 %v205, %v249
    %v258 = vadd.f32 %v206, %v250
    %v259 = vadd.f32 %v207, %v251
    %v260 = vadd.f32 %v208, %v252
    %v261 = vadd.f32 %v209, %v253
    %v262 = vadd.f32 %v210, %v254
    %263 = vset.pattern.permute.xlu0 4
    %264 = vperm.xlu0 %263, %v33
    %v265 = vpop.permute.xlu0 %264
    %267 = vset.pattern.permute.xlu0 4
    %268 = vperm.xlu0 %267, %v34
    %v269 = vpop.permute.xlu0 %268
    %271 = vset.pattern.permute.xlu0 4
    %272 = vperm.xlu0 %271, %v35
    %v273 = vpop.permute.xlu0 %272
    %275 = vset.pattern.permute.xlu0 4
    %276 = vperm.xlu0 %275, %v36
    %v277 = vpop.permute.xlu0 %276
    %279 = vset.pattern.permute.xlu0 4
    %280 = vperm.xlu0 %279, %v37
    %v281 = vpop.permute.xlu0 %280
    %283 = vset.pattern.permute.xlu0 4
    %284 = vperm.xlu0 %283, %v38
    %v285 = vpop.permute.xlu0 %284
    %287 = vset.pattern.permute.xlu0 4
    %288 = vperm.xlu0 %287, %v39
    %v289 = vpop.permute.xlu0 %288
    %291 = vset.pattern.permute.xlu0 4
    %292 = vperm.xlu0 %291, %v40
    %v293 = vpop.permute.xlu0 %292
    %v295 = vlaneseq
    %v296 = vshrl.u32 %v295, 7
    %v297 = vsub.s32 4, %v296
    %v298 = vrot.slane %v22, %v297
    %v299 = vmul.f32 %v265, %v298
    %v300 = vmul.f32 %v269, %v298
    %v301 = vmul.f32 %v273, %v298
    %v302 = vmul.f32 %v277, %v298
    %v303 = vmul.f32 %v281, %v298
    %v304 = vmul.f32 %v285, %v298
    %v305 = vmul.f32 %v289, %v298
    %v306 = vmul.f32 %v293, %v298
    %v307 = vadd.f32 %v255, %v299
    %v308 = vadd.f32 %v256, %v300
    %v309 = vadd.f32 %v257, %v301
    %v310 = vadd.f32 %v258, %v302
    %v311 = vadd.f32 %v259, %v303
    %v312 = vadd.f32 %v260, %v304
    %v313 = vadd.f32 %v261, %v305
    %v314 = vadd.f32 %v262, %v306
    %v315 = vmax.f32 %v307, 0.0
    %v316 = vmax.f32 %v308, 0.0
    %v317 = vmax.f32 %v309, 0.0
    %v318 = vmax.f32 %v310, 0.0
    %v319 = vmax.f32 %v311, 0.0
    %v320 = vmax.f32 %v312, 0.0
    %v321 = vmax.f32 %v313, 0.0
    %v322 = vmax.f32 %v314, 0.0
    %v323 = vpack.c.bf16 %v316, %v315
    %v324 = vpack.c.bf16 %v318, %v317
    %v325 = vpack.c.bf16 %v320, %v319
    %v326 = vpack.c.bf16 %v322, %v321
    %v335 = vunpack.c.l.b16 %v24
    %v336 = vunpack.c.h.b16 %v24
    %v337 = vunpack.c.l.b16 %v25
    %v338 = vunpack.c.h.b16 %v25
    %v339 = vunpack.c.l.b16 %v26
    %v340 = vunpack.c.h.b16 %v26
    %v341 = vunpack.c.l.b16 %v27
    %v342 = vunpack.c.h.b16 %v27
    %v343 = vunpack.c.l.b16 %v28
    %v344 = vunpack.c.h.b16 %v28
    %v345 = vunpack.c.l.b16 %v29
    %v346 = vunpack.c.h.b16 %v29
    %v347 = vunpack.c.l.b16 %v30
    %v348 = vunpack.c.h.b16 %v30
    %v349 = vunpack.c.l.b16 %v31
    %v350 = vunpack.c.h.b16 %v31
    %v351 = vpack.c.b16 %v337, %v335
    %v352 = vpack.c.b16 %v338, %v336
    %v353 = vpack.c.b16 %v341, %v339
    %v354 = vpack.c.b16 %v342, %v340
    %v355 = vpack.c.b16 %v345, %v343
    %v356 = vpack.c.b16 %v346, %v344
    %v357 = vpack.c.b16 %v349, %v347
    %v358 = vpack.c.b16 %v350, %v348
    %vm367 = vcmask 523264
    %v369 = vsel %vm367, %v323, 0
    %v372 = vsel %vm367, %v324, 0
    %v375 = vsel %vm367, %v325, 0
    %v378 = vsel %vm367, %v326, 0
    %380 = vmatprep.subr.bf16.mxu0 %v352
    %381 = vmatpush1.bf16.msra.mxu0 %v351
    %382 = vmatprep.subr.bf16.mxu0 %v354
    %383 = vmatpush1.bf16.msra.mxu0 %v353
    %384 = vmatprep.subr.bf16.mxu0 %v356
    %385 = vmatpush1.bf16.msra.mxu0 %v355
    %386 = vmatprep.subr.bf16.mxu0 %v358
    %387 = vmatpush1.bf16.msra.mxu0 %v357
    %388 = vmatprep.subr.bf16.mxu0 0
    %389 = vmatpush1.bf16.msra.mxu0 0
    %390 = vmatprep.subr.bf16.mxu0 0
    %391 = vmatpush1.bf16.msra.mxu0 0
    %392 = vmatprep.subr.bf16.mxu0 0
    %393 = vmatpush1.bf16.msra.mxu0 0
    %394 = vmatprep.subr.bf16.mxu0 0
    %395 = vmatpush1.bf16.msra.mxu0 0
    %396 = vmatprep.subr.bf16.mxu0 0
    %397 = vmatpush1.bf16.msra.mxu0 0
    %398 = vmatprep.subr.bf16.mxu0 0
    %399 = vmatpush1.bf16.msra.mxu0 0
    %400 = vmatprep.subr.bf16.mxu0 0
    %401 = vmatpush1.bf16.msra.mxu0 0
    %402 = vmatprep.subr.bf16.mxu0 0
    %403 = vmatpush1.bf16.msra.mxu0 0
    %404 = vmatprep.subr.bf16.mxu0 0
    %405 = vmatpush1.bf16.msra.mxu0 0
    %406 = vmatprep.subr.bf16.mxu0 0
    %407 = vmatpush1.bf16.msra.mxu0 0
    %408 = vmatprep.subr.bf16.mxu0 0
    %409 = vmatpush1.bf16.msra.mxu0 0
    %410 = vmatprep.subr.bf16.mxu0 0
    %411 = vmatpush1.bf16.msra.mxu0 0
    %412 = vmatprep.mubr.bf16.mxu0 0
    %413 = vmatmul.mubr.bf16.gmra.mrb[0].mxu0 %v369
    %v414 = vpop.f32.mrb[0].mxu0
    %v415 = vadd.f32 0.0, %v414
    %v416 = vpop.f32.mrb[0].mxu0
    %v417 = vadd.f32 0.0, %v416
    %v418 = vpop.f32.mrb[0].mxu0
    %v419 = vadd.f32 0.0, %v418
    %v420 = vpop.f32.mrb[0].mxu0
    %v421 = vadd.f32 0.0, %v420
    %422 = vmatprep.mubr.bf16.mxu0 0
    %423 = vmatmul.mubr.bf16.gmra.mrb[0].mxu0 %v372
    %v424 = vpop.f32.mrb[0].mxu0
    %v425 = vadd.f32 0.0, %v424
    %v426 = vpop.f32.mrb[0].mxu0
    %v427 = vadd.f32 0.0, %v426
    %v428 = vpop.f32.mrb[0].mxu0
    %v429 = vadd.f32 0.0, %v428
    %v430 = vpop.f32.mrb[0].mxu0
    %v431 = vadd.f32 0.0, %v430
    %432 = vmatprep.mubr.bf16.mxu0 0
    %433 = vmatmul.mubr.bf16.gmra.mrb[0].mxu0 %v375
    %v434 = vpop.f32.mrb[0].mxu0
    %v435 = vadd.f32 0.0, %v434
    %v436 = vpop.f32.mrb[0].mxu0
    %v437 = vadd.f32 0.0, %v436
    %v438 = vpop.f32.mrb[0].mxu0
    %v439 = vadd.f32 0.0, %v438
    %v440 = vpop.f32.mrb[0].mxu0
    %v441 = vadd.f32 0.0, %v440
    %442 = vmatprep.mubr.bf16.mxu0 0
    %443 = vmatmul.mubr.bf16.gmra.mrb[0].mxu0 %v378
    %v444 = vpop.f32.mrb[0].mxu0
    %v445 = vadd.f32 0.0, %v444
    %v446 = vpop.f32.mrb[0].mxu0
    %v447 = vadd.f32 0.0, %v446
    %v448 = vpop.f32.mrb[0].mxu0
    %v449 = vadd.f32 0.0, %v448
    %v450 = vpop.f32.mrb[0].mxu0
    %v451 = vadd.f32 0.0, %v450
    %452 = vdwg.mxu0
    %453 = vset.pattern.permute.xlu0 5
    %454 = vperm.xlu0 %453, %v33
    %v455 = vpop.permute.xlu0 %454
    %457 = vset.pattern.permute.xlu0 5
    %458 = vperm.xlu0 %457, %v34
    %v459 = vpop.permute.xlu0 %458
    %461 = vset.pattern.permute.xlu0 5
    %462 = vperm.xlu0 %461, %v35
    %v463 = vpop.permute.xlu0 %462
    %465 = vset.pattern.permute.xlu0 5
    %466 = vperm.xlu0 %465, %v36
    %v467 = vpop.permute.xlu0 %466
    %469 = vset.pattern.permute.xlu0 5
    %470 = vperm.xlu0 %469, %v37
    %v471 = vpop.permute.xlu0 %470
    %473 = vset.pattern.permute.xlu0 5
    %474 = vperm.xlu0 %473, %v38
    %v475 = vpop.permute.xlu0 %474
    %477 = vset.pattern.permute.xlu0 5
    %478 = vperm.xlu0 %477, %v39
    %v479 = vpop.permute.xlu0 %478
    %481 = vset.pattern.permute.xlu0 5
    %482 = vperm.xlu0 %481, %v40
    %v483 = vpop.permute.xlu0 %482
    %v485 = vmul.f32 %v455, %v84
    %v486 = vmul.f32 %v459, %v84
    %v487 = vmul.f32 %v463, %v84
    %v488 = vmul.f32 %v467, %v84
    %v489 = vmul.f32 %v471, %v84
    %v490 = vmul.f32 %v475, %v84
    %v491 = vmul.f32 %v479, %v84
    %v492 = vmul.f32 %v483, %v84
    %v493 = vadd.f32 %v97, %v485
    %v494 = vadd.f32 %v97, %v486
    %v495 = vadd.f32 %v97, %v487
    %v496 = vadd.f32 %v97, %v488
    %v497 = vadd.f32 %v97, %v489
    %v498 = vadd.f32 %v97, %v490
    %v499 = vadd.f32 %v97, %v491
    %v500 = vadd.f32 %v97, %v492
    %501 = vset.pattern.permute.xlu0 6
    %502 = vperm.xlu0 %501, %v33
    %v503 = vpop.permute.xlu0 %502
    %505 = vset.pattern.permute.xlu0 6
    %506 = vperm.xlu0 %505, %v34
    %v507 = vpop.permute.xlu0 %506
    %509 = vset.pattern.permute.xlu0 6
    %510 = vperm.xlu0 %509, %v35
    %v511 = vpop.permute.xlu0 %510
    %513 = vset.pattern.permute.xlu0 6
    %514 = vperm.xlu0 %513, %v36
    %v515 = vpop.permute.xlu0 %514
    %517 = vset.pattern.permute.xlu0 6
    %518 = vperm.xlu0 %517, %v37
    %v519 = vpop.permute.xlu0 %518
    %521 = vset.pattern.permute.xlu0 6
    %522 = vperm.xlu0 %521, %v38
    %v523 = vpop.permute.xlu0 %522
    %525 = vset.pattern.permute.xlu0 6
    %526 = vperm.xlu0 %525, %v39
    %v527 = vpop.permute.xlu0 %526
    %529 = vset.pattern.permute.xlu0 6
    %530 = vperm.xlu0 %529, %v40
    %v531 = vpop.permute.xlu0 %530
    %v533 = vmul.f32 %v503, %v142
    %v534 = vmul.f32 %v507, %v142
    %v535 = vmul.f32 %v511, %v142
    %v536 = vmul.f32 %v515, %v142
    %v537 = vmul.f32 %v519, %v142
    %v538 = vmul.f32 %v523, %v142
    %v539 = vmul.f32 %v527, %v142
    %v540 = vmul.f32 %v531, %v142
    %v541 = vadd.f32 %v493, %v533
    %v542 = vadd.f32 %v494, %v534
    %v543 = vadd.f32 %v495, %v535
    %v544 = vadd.f32 %v496, %v536
    %v545 = vadd.f32 %v497, %v537
    %v546 = vadd.f32 %v498, %v538
    %v547 = vadd.f32 %v499, %v539
    %v548 = vadd.f32 %v500, %v540
    %549 = vset.pattern.permute.xlu0 7
    %550 = vperm.xlu0 %549, %v33
    %v551 = vpop.permute.xlu0 %550
    %553 = vset.pattern.permute.xlu0 7
    %554 = vperm.xlu0 %553, %v34
    %v555 = vpop.permute.xlu0 %554
    %557 = vset.pattern.permute.xlu0 7
    %558 = vperm.xlu0 %557, %v35
    %v559 = vpop.permute.xlu0 %558
    %561 = vset.pattern.permute.xlu0 7
    %562 = vperm.xlu0 %561, %v36
    %v563 = vpop.permute.xlu0 %562
    %565 = vset.pattern.permute.xlu0 7
    %566 = vperm.xlu0 %565, %v37
    %v567 = vpop.permute.xlu0 %566
    %569 = vset.pattern.permute.xlu0 7
    %570 = vperm.xlu0 %569, %v38
    %v571 = vpop.permute.xlu0 %570
    %573 = vset.pattern.permute.xlu0 7
    %574 = vperm.xlu0 %573, %v39
    %v575 = vpop.permute.xlu0 %574
    %577 = vset.pattern.permute.xlu0 7
    %578 = vperm.xlu0 %577, %v40
    %v579 = vpop.permute.xlu0 %578
    %v581 = vmul.f32 %v551, %v194
    %v582 = vmul.f32 %v555, %v194
    %v583 = vmul.f32 %v559, %v194
    %v584 = vmul.f32 %v563, %v194
    %v585 = vmul.f32 %v567, %v194
    %v586 = vmul.f32 %v571, %v194
    %v587 = vmul.f32 %v575, %v194
    %v588 = vmul.f32 %v579, %v194
    %v589 = vadd.f32 %v541, %v581
    %v590 = vadd.f32 %v542, %v582
    %v591 = vadd.f32 %v543, %v583
    %v592 = vadd.f32 %v544, %v584
    %v593 = vadd.f32 %v545, %v585
    %v594 = vadd.f32 %v546, %v586
    %v595 = vadd.f32 %v547, %v587
    %v596 = vadd.f32 %v548, %v588
    %597 = vset.pattern.permute.xlu0 8
    %598 = vperm.xlu0 %597, %v33
    %v599 = vpop.permute.xlu0 %598
    %601 = vset.pattern.permute.xlu0 8
    %602 = vperm.xlu0 %601, %v34
    %v603 = vpop.permute.xlu0 %602
    %605 = vset.pattern.permute.xlu0 8
    %606 = vperm.xlu0 %605, %v35
    %v607 = vpop.permute.xlu0 %606
    %609 = vset.pattern.permute.xlu0 8
    %610 = vperm.xlu0 %609, %v36
    %v611 = vpop.permute.xlu0 %610
    %613 = vset.pattern.permute.xlu0 8
    %614 = vperm.xlu0 %613, %v37
    %v615 = vpop.permute.xlu0 %614
    %617 = vset.pattern.permute.xlu0 8
    %618 = vperm.xlu0 %617, %v38
    %v619 = vpop.permute.xlu0 %618
    %621 = vset.pattern.permute.xlu0 8
    %622 = vperm.xlu0 %621, %v39
    %v623 = vpop.permute.xlu0 %622
    %625 = vset.pattern.permute.xlu0 8
    %626 = vperm.xlu0 %625, %v40
    %v627 = vpop.permute.xlu0 %626
    %v629 = vmul.f32 %v599, %v246
    %v630 = vmul.f32 %v603, %v246
    %v631 = vmul.f32 %v607, %v246
    %v632 = vmul.f32 %v611, %v246
    %v633 = vmul.f32 %v615, %v246
    %v634 = vmul.f32 %v619, %v246
    %v635 = vmul.f32 %v623, %v246
    %v636 = vmul.f32 %v627, %v246
    %v637 = vadd.f32 %v589, %v629
    %v638 = vadd.f32 %v590, %v630
    %v639 = vadd.f32 %v591, %v631
    %v640 = vadd.f32 %v592, %v632
    %v641 = vadd.f32 %v593, %v633
    %v642 = vadd.f32 %v594, %v634
    %v643 = vadd.f32 %v595, %v635
    %v644 = vadd.f32 %v596, %v636
    %645 = vset.pattern.permute.xlu0 9
    %646 = vperm.xlu0 %645, %v33
    %v647 = vpop.permute.xlu0 %646
    %649 = vset.pattern.permute.xlu0 9
    %650 = vperm.xlu0 %649, %v34
    %v651 = vpop.permute.xlu0 %650
    %653 = vset.pattern.permute.xlu0 9
    %654 = vperm.xlu0 %653, %v35
    %v655 = vpop.permute.xlu0 %654
    %657 = vset.pattern.permute.xlu0 9
    %658 = vperm.xlu0 %657, %v36
    %v659 = vpop.permute.xlu0 %658
    %661 = vset.pattern.permute.xlu0 9
    %662 = vperm.xlu0 %661, %v37
    %v663 = vpop.permute.xlu0 %662
    %665 = vset.pattern.permute.xlu0 9
    %666 = vperm.xlu0 %665, %v38
    %v667 = vpop.permute.xlu0 %666
    %669 = vset.pattern.permute.xlu0 9
    %670 = vperm.xlu0 %669, %v39
    %v671 = vpop.permute.xlu0 %670
    %673 = vset.pattern.permute.xlu0 9
    %674 = vperm.xlu0 %673, %v40
    %v675 = vpop.permute.xlu0 %674
    %v677 = vmul.f32 %v647, %v298
    %v678 = vmul.f32 %v651, %v298
    %v679 = vmul.f32 %v655, %v298
    %v680 = vmul.f32 %v659, %v298
    %v681 = vmul.f32 %v663, %v298
    %v682 = vmul.f32 %v667, %v298
    %v683 = vmul.f32 %v671, %v298
    %v684 = vmul.f32 %v675, %v298
    %v685 = vadd.f32 %v637, %v677
    %v686 = vadd.f32 %v638, %v678
    %v687 = vadd.f32 %v639, %v679
    %v688 = vadd.f32 %v640, %v680
    %v689 = vadd.f32 %v641, %v681
    %v690 = vadd.f32 %v642, %v682
    %v691 = vadd.f32 %v643, %v683
    %v692 = vadd.f32 %v644, %v684
    %v693 = vmax.f32 %v685, 0.0
    %v694 = vmax.f32 %v686, 0.0
    %v695 = vmax.f32 %v687, 0.0
    %v696 = vmax.f32 %v688, 0.0
    %v697 = vmax.f32 %v689, 0.0
    %v698 = vmax.f32 %v690, 0.0
    %v699 = vmax.f32 %v691, 0.0
    %v700 = vmax.f32 %v692, 0.0
    %v701 = vpack.c.bf16 %v694, %v693
    %v702 = vpack.c.bf16 %v696, %v695
    %v703 = vpack.c.bf16 %v698, %v697
    %v704 = vpack.c.bf16 %v700, %v699
    %v706 = vsel %vm367, %v701, 0
    %v709 = vsel %vm367, %v702, 0
    %v712 = vsel %vm367, %v703, 0
    %v715 = vsel %vm367, %v704, 0
    %717 = vmatprep.subr.bf16.mxu0 %v352
    %718 = vmatpush1.bf16.msra.mxu0 %v351
    %719 = vmatprep.subr.bf16.mxu0 %v354
    %720 = vmatpush1.bf16.msra.mxu0 %v353
    %721 = vmatprep.subr.bf16.mxu0 %v356
    %722 = vmatpush1.bf16.msra.mxu0 %v355
    %723 = vmatprep.subr.bf16.mxu0 %v358
    %724 = vmatpush1.bf16.msra.mxu0 %v357
    %725 = vmatprep.subr.bf16.mxu0 0
    %726 = vmatpush1.bf16.msra.mxu0 0
    %727 = vmatprep.subr.bf16.mxu0 0
    %728 = vmatpush1.bf16.msra.mxu0 0
    %729 = vmatprep.subr.bf16.mxu0 0
    %730 = vmatpush1.bf16.msra.mxu0 0
    %731 = vmatprep.subr.bf16.mxu0 0
    %732 = vmatpush1.bf16.msra.mxu0 0
    %733 = vmatprep.subr.bf16.mxu0 0
    %734 = vmatpush1.bf16.msra.mxu0 0
    %735 = vmatprep.subr.bf16.mxu0 0
    %736 = vmatpush1.bf16.msra.mxu0 0
    %737 = vmatprep.subr.bf16.mxu0 0
    %738 = vmatpush1.bf16.msra.mxu0 0
    %739 = vmatprep.subr.bf16.mxu0 0
    %740 = vmatpush1.bf16.msra.mxu0 0
    %741 = vmatprep.subr.bf16.mxu0 0
    %742 = vmatpush1.bf16.msra.mxu0 0
    %743 = vmatprep.subr.bf16.mxu0 0
    %744 = vmatpush1.bf16.msra.mxu0 0
    %745 = vmatprep.subr.bf16.mxu0 0
    %746 = vmatpush1.bf16.msra.mxu0 0
    %747 = vmatprep.subr.bf16.mxu0 0
    %748 = vmatpush1.bf16.msra.mxu0 0
    %749 = vmatprep.mubr.bf16.mxu0 0
    %750 = vmatmul.mubr.bf16.gmra.mrb[0].mxu0 %v706
    %v751 = vpop.f32.mrb[0].mxu0
    %v752 = vadd.f32 0.0, %v751
    %v753 = vpop.f32.mrb[0].mxu0
    %v754 = vadd.f32 0.0, %v753
    %v755 = vpop.f32.mrb[0].mxu0
    %v756 = vadd.f32 0.0, %v755
    %v757 = vpop.f32.mrb[0].mxu0
    %v758 = vadd.f32 0.0, %v757
    %759 = vmatprep.mubr.bf16.mxu0 0
    %760 = vmatmul.mubr.bf16.gmra.mrb[0].mxu0 %v709
    %v761 = vpop.f32.mrb[0].mxu0
    %v762 = vadd.f32 0.0, %v761
    %v763 = vpop.f32.mrb[0].mxu0
    %v764 = vadd.f32 0.0, %v763
    %v765 = vpop.f32.mrb[0].mxu0
    %v766 = vadd.f32 0.0, %v765
    %v767 = vpop.f32.mrb[0].mxu0
    %v768 = vadd.f32 0.0, %v767
    %769 = vmatprep.mubr.bf16.mxu0 0
    %770 = vmatmul.mubr.bf16.gmra.mrb[0].mxu0 %v712
    %v771 = vpop.f32.mrb[0].mxu0
    %v772 = vadd.f32 0.0, %v771
    %v773 = vpop.f32.mrb[0].mxu0
    %v774 = vadd.f32 0.0, %v773
    %v775 = vpop.f32.mrb[0].mxu0
    %v776 = vadd.f32 0.0, %v775
    %v777 = vpop.f32.mrb[0].mxu0
    %v778 = vadd.f32 0.0, %v777
    %779 = vmatprep.mubr.bf16.mxu0 0
    %780 = vmatmul.mubr.bf16.gmra.mrb[0].mxu0 %v715
    %v781 = vpop.f32.mrb[0].mxu0
    %v782 = vadd.f32 0.0, %v781
    %v783 = vpop.f32.mrb[0].mxu0
    %v784 = vadd.f32 0.0, %v783
    %v785 = vpop.f32.mrb[0].mxu0
    %v786 = vadd.f32 0.0, %v785
    %v787 = vpop.f32.mrb[0].mxu0
    %v788 = vadd.f32 0.0, %v787
    %789 = vdwg.mxu0
    %v790 = vmax.f32 %v415, %v752
    %v791 = vmax.f32 %v417, %v754
    %v792 = vmax.f32 %v419, %v756
    %v793 = vmax.f32 %v421, %v758
    %v794 = vmax.f32 %v425, %v762
    %v795 = vmax.f32 %v427, %v764
    %v796 = vmax.f32 %v429, %v766
    %v797 = vmax.f32 %v431, %v768
    %v798 = vmax.f32 %v435, %v772
    %v799 = vmax.f32 %v437, %v774
    %v800 = vmax.f32 %v439, %v776
    %v801 = vmax.f32 %v441, %v778
    %v802 = vmax.f32 %v445, %v782
    %v803 = vmax.f32 %v447, %v784
    %v804 = vmax.f32 %v449, %v786
    %v805 = vmax.f32 %v451, %v788
    %806 = vset.pattern.permute.xlu0 10
    %807 = vperm.xlu0 %806, %v33
    %v808 = vpop.permute.xlu0 %807
    %810 = vset.pattern.permute.xlu0 10
    %811 = vperm.xlu0 %810, %v34
    %v812 = vpop.permute.xlu0 %811
    %814 = vset.pattern.permute.xlu0 10
    %815 = vperm.xlu0 %814, %v35
    %v816 = vpop.permute.xlu0 %815
    %818 = vset.pattern.permute.xlu0 10
    %819 = vperm.xlu0 %818, %v36
    %v820 = vpop.permute.xlu0 %819
    %822 = vset.pattern.permute.xlu0 10
    %823 = vperm.xlu0 %822, %v37
    %v824 = vpop.permute.xlu0 %823
    %826 = vset.pattern.permute.xlu0 10
    %827 = vperm.xlu0 %826, %v38
    %v828 = vpop.permute.xlu0 %827
    %830 = vset.pattern.permute.xlu0 10
    %831 = vperm.xlu0 %830, %v39
    %v832 = vpop.permute.xlu0 %831
    %834 = vset.pattern.permute.xlu0 10
    %835 = vperm.xlu0 %834, %v40
    %v836 = vpop.permute.xlu0 %835
    %v838 = vmul.f32 %v808, %v84
    %v839 = vmul.f32 %v812, %v84
    %v840 = vmul.f32 %v816, %v84
    %v841 = vmul.f32 %v820, %v84
    %v842 = vmul.f32 %v824, %v84
    %v843 = vmul.f32 %v828, %v84
    %v844 = vmul.f32 %v832, %v84
    %v845 = vmul.f32 %v836, %v84
    %v846 = vadd.f32 %v97, %v838
    %v847 = vadd.f32 %v97, %v839
    %v848 = vadd.f32 %v97, %v840
    %v849 = vadd.f32 %v97, %v841
    %v850 = vadd.f32 %v97, %v842
    %v851 = vadd.f32 %v97, %v843
    %v852 = vadd.f32 %v97, %v844
    %v853 = vadd.f32 %v97, %v845
    %854 = vset.pattern.permute.xlu0 11
    %855 = vperm.xlu0 %854, %v33
    %v856 = vpop.permute.xlu0 %855
    %858 = vset.pattern.permute.xlu0 11
    %859 = vperm.xlu0 %858, %v34
    %v860 = vpop.permute.xlu0 %859
    %862 = vset.pattern.permute.xlu0 11
    %863 = vperm.xlu0 %862, %v35
    %v864 = vpop.permute.xlu0 %863
    %866 = vset.pattern.permute.xlu0 11
    %867 = vperm.xlu0 %866, %v36
    %v868 = vpop.permute.xlu0 %867
    %870 = vset.pattern.permute.xlu0 11
    %871 = vperm.xlu0 %870, %v37
    %v872 = vpop.permute.xlu0 %871
    %874 = vset.pattern.permute.xlu0 11
    %875 = vperm.xlu0 %874, %v38
    %v876 = vpop.permute.xlu0 %875
    %878 = vset.pattern.permute.xlu0 11
    %879 = vperm.xlu0 %878, %v39
    %v880 = vpop.permute.xlu0 %879
    %882 = vset.pattern.permute.xlu0 11
    %883 = vperm.xlu0 %882, %v40
    %v884 = vpop.permute.xlu0 %883
    %v886 = vmul.f32 %v856, %v142
    %v887 = vmul.f32 %v860, %v142
    %v888 = vmul.f32 %v864, %v142
    %v889 = vmul.f32 %v868, %v142
    %v890 = vmul.f32 %v872, %v142
    %v891 = vmul.f32 %v876, %v142
    %v892 = vmul.f32 %v880, %v142
    %v893 = vmul.f32 %v884, %v142
    %v894 = vadd.f32 %v846, %v886
    %v895 = vadd.f32 %v847, %v887
    %v896 = vadd.f32 %v848, %v888
    %v897 = vadd.f32 %v849, %v889
    %v898 = vadd.f32 %v850, %v890
    %v899 = vadd.f32 %v851, %v891
    %v900 = vadd.f32 %v852, %v892
    %v901 = vadd.f32 %v853, %v893
    %902 = vset.pattern.permute.xlu0 12
    %903 = vperm.xlu0 %902, %v33
    %v904 = vpop.permute.xlu0 %903
    %906 = vset.pattern.permute.xlu0 12
    %907 = vperm.xlu0 %906, %v34
    %v908 = vpop.permute.xlu0 %907
    %910 = vset.pattern.permute.xlu0 12
    %911 = vperm.xlu0 %910, %v35
    %v912 = vpop.permute.xlu0 %911
    %914 = vset.pattern.permute.xlu0 12
    %915 = vperm.xlu0 %914, %v36
    %v916 = vpop.permute.xlu0 %915
    %918 = vset.pattern.permute.xlu0 12
    %919 = vperm.xlu0 %918, %v37
    %v920 = vpop.permute.xlu0 %919
    %922 = vset.pattern.permute.xlu0 12
    %923 = vperm.xlu0 %922, %v38
    %v924 = vpop.permute.xlu0 %923
    %926 = vset.pattern.permute.xlu0 12
    %927 = vperm.xlu0 %926, %v39
    %v928 = vpop.permute.xlu0 %927
    %930 = vset.pattern.permute.xlu0 12
    %931 = vperm.xlu0 %930, %v40
    %v932 = vpop.permute.xlu0 %931
    %v934 = vmul.f32 %v904, %v194
    %v935 = vmul.f32 %v908, %v194
    %v936 = vmul.f32 %v912, %v194
    %v937 = vmul.f32 %v916, %v194
    %v938 = vmul.f32 %v920, %v194
    %v939 = vmul.f32 %v924, %v194
    %v940 = vmul.f32 %v928, %v194
    %v941 = vmul.f32 %v932, %v194
    %v942 = vadd.f32 %v894, %v934
    %v943 = vadd.f32 %v895, %v935
    %v944 = vadd.f32 %v896, %v936
    %v945 = vadd.f32 %v897, %v937
    %v946 = vadd.f32 %v898, %v938
    %v947 = vadd.f32 %v899, %v939
    %v948 = vadd.f32 %v900, %v940
    %v949 = vadd.f32 %v901, %v941
    %950 = vset.pattern.permute.xlu0 13
    %951 = vperm.xlu0 %950, %v33
    %v952 = vpop.permute.xlu0 %951
    %954 = vset.pattern.permute.xlu0 13
    %955 = vperm.xlu0 %954, %v34
    %v956 = vpop.permute.xlu0 %955
    %958 = vset.pattern.permute.xlu0 13
    %959 = vperm.xlu0 %958, %v35
    %v960 = vpop.permute.xlu0 %959
    %962 = vset.pattern.permute.xlu0 13
    %963 = vperm.xlu0 %962, %v36
    %v964 = vpop.permute.xlu0 %963
    %966 = vset.pattern.permute.xlu0 13
    %967 = vperm.xlu0 %966, %v37
    %v968 = vpop.permute.xlu0 %967
    %970 = vset.pattern.permute.xlu0 13
    %971 = vperm.xlu0 %970, %v38
    %v972 = vpop.permute.xlu0 %971
    %974 = vset.pattern.permute.xlu0 13
    %975 = vperm.xlu0 %974, %v39
    %v976 = vpop.permute.xlu0 %975
    %978 = vset.pattern.permute.xlu0 13
    %979 = vperm.xlu0 %978, %v40
    %v980 = vpop.permute.xlu0 %979
    %v982 = vmul.f32 %v952, %v246
    %v983 = vmul.f32 %v956, %v246
    %v984 = vmul.f32 %v960, %v246
    %v985 = vmul.f32 %v964, %v246
    %v986 = vmul.f32 %v968, %v246
    %v987 = vmul.f32 %v972, %v246
    %v988 = vmul.f32 %v976, %v246
    %v989 = vmul.f32 %v980, %v246
    %v990 = vadd.f32 %v942, %v982
    %v991 = vadd.f32 %v943, %v983
    %v992 = vadd.f32 %v944, %v984
    %v993 = vadd.f32 %v945, %v985
    %v994 = vadd.f32 %v946, %v986
    %v995 = vadd.f32 %v947, %v987
    %v996 = vadd.f32 %v948, %v988
    %v997 = vadd.f32 %v949, %v989
    %998 = vset.pattern.permute.xlu0 14
    %999 = vperm.xlu0 %998, %v33
    %v1000 = vpop.permute.xlu0 %999
    %1002 = vset.pattern.permute.xlu0 14
    %1003 = vperm.xlu0 %1002, %v34
    %v1004 = vpop.permute.xlu0 %1003
    %1006 = vset.pattern.permute.xlu0 14
    %1007 = vperm.xlu0 %1006, %v35
    %v1008 = vpop.permute.xlu0 %1007
    %1010 = vset.pattern.permute.xlu0 14
    %1011 = vperm.xlu0 %1010, %v36
    %v1012 = vpop.permute.xlu0 %1011
    %1014 = vset.pattern.permute.xlu0 14
    %1015 = vperm.xlu0 %1014, %v37
    %v1016 = vpop.permute.xlu0 %1015
    %1018 = vset.pattern.permute.xlu0 14
    %1019 = vperm.xlu0 %1018, %v38
    %v1020 = vpop.permute.xlu0 %1019
    %1022 = vset.pattern.permute.xlu0 14
    %1023 = vperm.xlu0 %1022, %v39
    %v1024 = vpop.permute.xlu0 %1023
    %1026 = vset.pattern.permute.xlu0 14
    %1027 = vperm.xlu0 %1026, %v40
    %v1028 = vpop.permute.xlu0 %1027
    %v1030 = vmul.f32 %v1000, %v298
    %v1031 = vmul.f32 %v1004, %v298
    %v1032 = vmul.f32 %v1008, %v298
    %v1033 = vmul.f32 %v1012, %v298
    %v1034 = vmul.f32 %v1016, %v298
    %v1035 = vmul.f32 %v1020, %v298
    %v1036 = vmul.f32 %v1024, %v298
    %v1037 = vmul.f32 %v1028, %v298
    %v1038 = vadd.f32 %v990, %v1030
    %v1039 = vadd.f32 %v991, %v1031
    %v1040 = vadd.f32 %v992, %v1032
    %v1041 = vadd.f32 %v993, %v1033
    %v1042 = vadd.f32 %v994, %v1034
    %v1043 = vadd.f32 %v995, %v1035
    %v1044 = vadd.f32 %v996, %v1036
    %v1045 = vadd.f32 %v997, %v1037
    %v1046 = vmax.f32 %v1038, 0.0
    %v1047 = vmax.f32 %v1039, 0.0
    %v1048 = vmax.f32 %v1040, 0.0
    %v1049 = vmax.f32 %v1041, 0.0
    %v1050 = vmax.f32 %v1042, 0.0
    %v1051 = vmax.f32 %v1043, 0.0
    %v1052 = vmax.f32 %v1044, 0.0
    %v1053 = vmax.f32 %v1045, 0.0
    %v1054 = vpack.c.bf16 %v1047, %v1046
    %v1055 = vpack.c.bf16 %v1049, %v1048
    %v1056 = vpack.c.bf16 %v1051, %v1050
    %v1057 = vpack.c.bf16 %v1053, %v1052
    %v1059 = vsel %vm367, %v1054, 0
    %v1062 = vsel %vm367, %v1055, 0
    %v1065 = vsel %vm367, %v1056, 0
    %v1068 = vsel %vm367, %v1057, 0
    %1070 = vmatprep.subr.bf16.mxu0 %v352
    %1071 = vmatpush1.bf16.msra.mxu0 %v351
    %1072 = vmatprep.subr.bf16.mxu0 %v354
    %1073 = vmatpush1.bf16.msra.mxu0 %v353
    %1074 = vmatprep.subr.bf16.mxu0 %v356
    %1075 = vmatpush1.bf16.msra.mxu0 %v355
    %1076 = vmatprep.subr.bf16.mxu0 %v358
    %1077 = vmatpush1.bf16.msra.mxu0 %v357
    %1078 = vmatprep.subr.bf16.mxu0 0
    %1079 = vmatpush1.bf16.msra.mxu0 0
    %1080 = vmatprep.subr.bf16.mxu0 0
    %1081 = vmatpush1.bf16.msra.mxu0 0
    %1082 = vmatprep.subr.bf16.mxu0 0
    %1083 = vmatpush1.bf16.msra.mxu0 0
    %1084 = vmatprep.subr.bf16.mxu0 0
    %1085 = vmatpush1.bf16.msra.mxu0 0
    %1086 = vmatprep.subr.bf16.mxu0 0
    %1087 = vmatpush1.bf16.msra.mxu0 0
    %1088 = vmatprep.subr.bf16.mxu0 0
    %1089 = vmatpush1.bf16.msra.mxu0 0
    %1090 = vmatprep.subr.bf16.mxu0 0
    %1091 = vmatpush1.bf16.msra.mxu0 0
    %1092 = vmatprep.subr.bf16.mxu0 0
    %1093 = vmatpush1.bf16.msra.mxu0 0
    %1094 = vmatprep.subr.bf16.mxu0 0
    %1095 = vmatpush1.bf16.msra.mxu0 0
    %1096 = vmatprep.subr.bf16.mxu0 0
    %1097 = vmatpush1.bf16.msra.mxu0 0
    %1098 = vmatprep.subr.bf16.mxu0 0
    %1099 = vmatpush1.bf16.msra.mxu0 0
    %1100 = vmatprep.subr.bf16.mxu0 0
    %1101 = vmatpush1.bf16.msra.mxu0 0
    %1102 = vmatprep.mubr.bf16.mxu0 0
    %1103 = vmatmul.mubr.bf16.gmra.mrb[0].mxu0 %v1059
    %v1104 = vpop.f32.mrb[0].mxu0
    %v1105 = vadd.f32 0.0, %v1104
    %v1106 = vpop.f32.mrb[0].mxu0
    %v1107 = vadd.f32 0.0, %v1106
    %v1108 = vpop.f32.mrb[0].mxu0
    %v1109 = vadd.f32 0.0, %v1108
    %v1110 = vpop.f32.mrb[0].mxu0
    %v1111 = vadd.f32 0.0, %v1110
    %1112 = vmatprep.mubr.bf16.mxu0 0
    %1113 = vmatmul.mubr.bf16.gmra.mrb[0].mxu0 %v1062
    %v1114 = vpop.f32.mrb[0].mxu0
    %v1115 = vadd.f32 0.0, %v1114
    %v1116 = vpop.f32.mrb[0].mxu0
    %v1117 = vadd.f32 0.0, %v1116
    %v1118 = vpop.f32.mrb[0].mxu0
    %v1119 = vadd.f32 0.0, %v1118
    %v1120 = vpop.f32.mrb[0].mxu0
    %v1121 = vadd.f32 0.0, %v1120
    %1122 = vmatprep.mubr.bf16.mxu0 0
    %1123 = vmatmul.mubr.bf16.gmra.mrb[0].mxu0 %v1065
    %v1124 = vpop.f32.mrb[0].mxu0
    %v1125 = vadd.f32 0.0, %v1124
    %v1126 = vpop.f32.mrb[0].mxu0
    %v1127 = vadd.f32 0.0, %v1126
    %v1128 = vpop.f32.mrb[0].mxu0
    %v1129 = vadd.f32 0.0, %v1128
    %v1130 = vpop.f32.mrb[0].mxu0
    %v1131 = vadd.f32 0.0, %v1130
    %1132 = vmatprep.mubr.bf16.mxu0 0
    %1133 = vmatmul.mubr.bf16.gmra.mrb[0].mxu0 %v1068
    %v1134 = vpop.f32.mrb[0].mxu0
    %v1135 = vadd.f32 0.0, %v1134
    %v1136 = vpop.f32.mrb[0].mxu0
    %v1137 = vadd.f32 0.0, %v1136
    %v1138 = vpop.f32.mrb[0].mxu0
    %v1139 = vadd.f32 0.0, %v1138
    %v1140 = vpop.f32.mrb[0].mxu0
    %v1141 = vadd.f32 0.0, %v1140
    %1142 = vdwg.mxu0
    %v1143 = vmax.f32 %v790, %v1105
    %v1144 = vmax.f32 %v791, %v1107
    %v1145 = vmax.f32 %v792, %v1109
    %v1146 = vmax.f32 %v793, %v1111
    %v1147 = vmax.f32 %v794, %v1115
    %v1148 = vmax.f32 %v795, %v1117
    %v1149 = vmax.f32 %v796, %v1119
    %v1150 = vmax.f32 %v797, %v1121
    %v1151 = vmax.f32 %v798, %v1125
    %v1152 = vmax.f32 %v799, %v1127
    %v1153 = vmax.f32 %v800, %v1129
    %v1154 = vmax.f32 %v801, %v1131
    %v1155 = vmax.f32 %v802, %v1135
    %v1156 = vmax.f32 %v803, %v1137
    %v1157 = vmax.f32 %v804, %v1139
    %v1158 = vmax.f32 %v805, %v1141
    %1159 = vset.pattern.permute.xlu0 15
    %1160 = vperm.xlu0 %1159, %v33
    %v1161 = vpop.permute.xlu0 %1160
    %1163 = vset.pattern.permute.xlu0 15
    %1164 = vperm.xlu0 %1163, %v34
    %v1165 = vpop.permute.xlu0 %1164
    %1167 = vset.pattern.permute.xlu0 15
    %1168 = vperm.xlu0 %1167, %v35
    %v1169 = vpop.permute.xlu0 %1168
    %1171 = vset.pattern.permute.xlu0 15
    %1172 = vperm.xlu0 %1171, %v36
    %v1173 = vpop.permute.xlu0 %1172
    %1175 = vset.pattern.permute.xlu0 15
    %1176 = vperm.xlu0 %1175, %v37
    %v1177 = vpop.permute.xlu0 %1176
    %1179 = vset.pattern.permute.xlu0 15
    %1180 = vperm.xlu0 %1179, %v38
    %v1181 = vpop.permute.xlu0 %1180
    %1183 = vset.pattern.permute.xlu0 15
    %1184 = vperm.xlu0 %1183, %v39
    %v1185 = vpop.permute.xlu0 %1184
    %1187 = vset.pattern.permute.xlu0 15
    %1188 = vperm.xlu0 %1187, %v40
    %v1189 = vpop.permute.xlu0 %1188
    %v1191 = vmul.f32 %v1161, %v84
    %v1192 = vmul.f32 %v1165, %v84
    %v1193 = vmul.f32 %v1169, %v84
    %v1194 = vmul.f32 %v1173, %v84
    %v1195 = vmul.f32 %v1177, %v84
    %v1196 = vmul.f32 %v1181, %v84
    %v1197 = vmul.f32 %v1185, %v84
    %v1198 = vmul.f32 %v1189, %v84
    %v1199 = vadd.f32 %v97, %v1191
    %v1200 = vadd.f32 %v97, %v1192
    %v1201 = vadd.f32 %v97, %v1193
    %v1202 = vadd.f32 %v97, %v1194
    %v1203 = vadd.f32 %v97, %v1195
    %v1204 = vadd.f32 %v97, %v1196
    %v1205 = vadd.f32 %v97, %v1197
    %v1206 = vadd.f32 %v97, %v1198
    %1207 = vset.pattern.permute.xlu0 16
    %1208 = vperm.xlu0 %1207, %v33
    %v1209 = vpop.permute.xlu0 %1208
    %1211 = vset.pattern.permute.xlu0 16
    %1212 = vperm.xlu0 %1211, %v34
    %v1213 = vpop.permute.xlu0 %1212
    %1215 = vset.pattern.permute.xlu0 16
    %1216 = vperm.xlu0 %1215, %v35
    %v1217 = vpop.permute.xlu0 %1216
    %1219 = vset.pattern.permute.xlu0 16
    %1220 = vperm.xlu0 %1219, %v36
    %v1221 = vpop.permute.xlu0 %1220
    %1223 = vset.pattern.permute.xlu0 16
    %1224 = vperm.xlu0 %1223, %v37
    %v1225 = vpop.permute.xlu0 %1224
    %1227 = vset.pattern.permute.xlu0 16
    %1228 = vperm.xlu0 %1227, %v38
    %v1229 = vpop.permute.xlu0 %1228
    %1231 = vset.pattern.permute.xlu0 16
    %1232 = vperm.xlu0 %1231, %v39
    %v1233 = vpop.permute.xlu0 %1232
    %1235 = vset.pattern.permute.xlu0 16
    %1236 = vperm.xlu0 %1235, %v40
    %v1237 = vpop.permute.xlu0 %1236
    %v1239 = vmul.f32 %v1209, %v142
    %v1240 = vmul.f32 %v1213, %v142
    %v1241 = vmul.f32 %v1217, %v142
    %v1242 = vmul.f32 %v1221, %v142
    %v1243 = vmul.f32 %v1225, %v142
    %v1244 = vmul.f32 %v1229, %v142
    %v1245 = vmul.f32 %v1233, %v142
    %v1246 = vmul.f32 %v1237, %v142
    %v1247 = vadd.f32 %v1199, %v1239
    %v1248 = vadd.f32 %v1200, %v1240
    %v1249 = vadd.f32 %v1201, %v1241
    %v1250 = vadd.f32 %v1202, %v1242
    %v1251 = vadd.f32 %v1203, %v1243
    %v1252 = vadd.f32 %v1204, %v1244
    %v1253 = vadd.f32 %v1205, %v1245
    %v1254 = vadd.f32 %v1206, %v1246
    %1255 = vset.pattern.permute.xlu0 17
    %1256 = vperm.xlu0 %1255, %v33
    %v1257 = vpop.permute.xlu0 %1256
    %1259 = vset.pattern.permute.xlu0 17
    %1260 = vperm.xlu0 %1259, %v34
    %v1261 = vpop.permute.xlu0 %1260
    %1263 = vset.pattern.permute.xlu0 17
    %1264 = vperm.xlu0 %1263, %v35
    %v1265 = vpop.permute.xlu0 %1264
    %1267 = vset.pattern.permute.xlu0 17
    %1268 = vperm.xlu0 %1267, %v36
    %v1269 = vpop.permute.xlu0 %1268
    %1271 = vset.pattern.permute.xlu0 17
    %1272 = vperm.xlu0 %1271, %v37
    %v1273 = vpop.permute.xlu0 %1272
    %1275 = vset.pattern.permute.xlu0 17
    %1276 = vperm.xlu0 %1275, %v38
    %v1277 = vpop.permute.xlu0 %1276
    %1279 = vset.pattern.permute.xlu0 17
    %1280 = vperm.xlu0 %1279, %v39
    %v1281 = vpop.permute.xlu0 %1280
    %1283 = vset.pattern.permute.xlu0 17
    %1284 = vperm.xlu0 %1283, %v40
    %v1285 = vpop.permute.xlu0 %1284
    %v1287 = vmul.f32 %v1257, %v194
    %v1288 = vmul.f32 %v1261, %v194
    %v1289 = vmul.f32 %v1265, %v194
    %v1290 = vmul.f32 %v1269, %v194
    %v1291 = vmul.f32 %v1273, %v194
    %v1292 = vmul.f32 %v1277, %v194
    %v1293 = vmul.f32 %v1281, %v194
    %v1294 = vmul.f32 %v1285, %v194
    %v1295 = vadd.f32 %v1247, %v1287
    %v1296 = vadd.f32 %v1248, %v1288
    %v1297 = vadd.f32 %v1249, %v1289
    %v1298 = vadd.f32 %v1250, %v1290
    %v1299 = vadd.f32 %v1251, %v1291
    %v1300 = vadd.f32 %v1252, %v1292
    %v1301 = vadd.f32 %v1253, %v1293
    %v1302 = vadd.f32 %v1254, %v1294
    %1303 = vset.pattern.permute.xlu0 18
    %1304 = vperm.xlu0 %1303, %v33
    %v1305 = vpop.permute.xlu0 %1304
    %1307 = vset.pattern.permute.xlu0 18
    %1308 = vperm.xlu0 %1307, %v34
    %v1309 = vpop.permute.xlu0 %1308
    %1311 = vset.pattern.permute.xlu0 18
    %1312 = vperm.xlu0 %1311, %v35
    %v1313 = vpop.permute.xlu0 %1312
    %1315 = vset.pattern.permute.xlu0 18
    %1316 = vperm.xlu0 %1315, %v36
    %v1317 = vpop.permute.xlu0 %1316
    %1319 = vset.pattern.permute.xlu0 18
    %1320 = vperm.xlu0 %1319, %v37
    %v1321 = vpop.permute.xlu0 %1320
    %1323 = vset.pattern.permute.xlu0 18
    %1324 = vperm.xlu0 %1323, %v38
    %v1325 = vpop.permute.xlu0 %1324
    %1327 = vset.pattern.permute.xlu0 18
    %1328 = vperm.xlu0 %1327, %v39
    %v1329 = vpop.permute.xlu0 %1328
    %1331 = vset.pattern.permute.xlu0 18
    %1332 = vperm.xlu0 %1331, %v40
    %v1333 = vpop.permute.xlu0 %1332
    %v1335 = vmul.f32 %v1305, %v246
    %v1336 = vmul.f32 %v1309, %v246
    %v1337 = vmul.f32 %v1313, %v246
    %v1338 = vmul.f32 %v1317, %v246
    %v1339 = vmul.f32 %v1321, %v246
    %v1340 = vmul.f32 %v1325, %v246
    %v1341 = vmul.f32 %v1329, %v246
    %v1342 = vmul.f32 %v1333, %v246
    %v1343 = vadd.f32 %v1295, %v1335
    %v1344 = vadd.f32 %v1296, %v1336
    %v1345 = vadd.f32 %v1297, %v1337
    %v1346 = vadd.f32 %v1298, %v1338
    %v1347 = vadd.f32 %v1299, %v1339
    %v1348 = vadd.f32 %v1300, %v1340
    %v1349 = vadd.f32 %v1301, %v1341
    %v1350 = vadd.f32 %v1302, %v1342
    %1351 = vset.pattern.permute.xlu0 19
    %1352 = vperm.xlu0 %1351, %v33
    %v1353 = vpop.permute.xlu0 %1352
    %1355 = vset.pattern.permute.xlu0 19
    %1356 = vperm.xlu0 %1355, %v34
    %v1357 = vpop.permute.xlu0 %1356
    %1359 = vset.pattern.permute.xlu0 19
    %1360 = vperm.xlu0 %1359, %v35
    %v1361 = vpop.permute.xlu0 %1360
    %1363 = vset.pattern.permute.xlu0 19
    %1364 = vperm.xlu0 %1363, %v36
    %v1365 = vpop.permute.xlu0 %1364
    %1367 = vset.pattern.permute.xlu0 19
    %1368 = vperm.xlu0 %1367, %v37
    %v1369 = vpop.permute.xlu0 %1368
    %1371 = vset.pattern.permute.xlu0 19
    %1372 = vperm.xlu0 %1371, %v38
    %v1373 = vpop.permute.xlu0 %1372
    %1375 = vset.pattern.permute.xlu0 19
    %1376 = vperm.xlu0 %1375, %v39
    %v1377 = vpop.permute.xlu0 %1376
    %1379 = vset.pattern.permute.xlu0 19
    %1380 = vperm.xlu0 %1379, %v40
    %v1381 = vpop.permute.xlu0 %1380
    %v1383 = vmul.f32 %v1353, %v298
    %v1384 = vmul.f32 %v1357, %v298
    %v1385 = vmul.f32 %v1361, %v298
    %v1386 = vmul.f32 %v1365, %v298
    %v1387 = vmul.f32 %v1369, %v298
    %v1388 = vmul.f32 %v1373, %v298
    %v1389 = vmul.f32 %v1377, %v298
    %v1390 = vmul.f32 %v1381, %v298
    %v1391 = vadd.f32 %v1343, %v1383
    %v1392 = vadd.f32 %v1344, %v1384
    %v1393 = vadd.f32 %v1345, %v1385
    %v1394 = vadd.f32 %v1346, %v1386
    %v1395 = vadd.f32 %v1347, %v1387
    %v1396 = vadd.f32 %v1348, %v1388
    %v1397 = vadd.f32 %v1349, %v1389
    %v1398 = vadd.f32 %v1350, %v1390
    %v1399 = vmax.f32 %v1391, 0.0
    %v1400 = vmax.f32 %v1392, 0.0
    %v1401 = vmax.f32 %v1393, 0.0
    %v1402 = vmax.f32 %v1394, 0.0
    %v1403 = vmax.f32 %v1395, 0.0
    %v1404 = vmax.f32 %v1396, 0.0
    %v1405 = vmax.f32 %v1397, 0.0
    %v1406 = vmax.f32 %v1398, 0.0
    %v1407 = vpack.c.bf16 %v1400, %v1399
    %v1408 = vpack.c.bf16 %v1402, %v1401
    %v1409 = vpack.c.bf16 %v1404, %v1403
    %v1410 = vpack.c.bf16 %v1406, %v1405
    %v1412 = vsel %vm367, %v1407, 0
    %v1415 = vsel %vm367, %v1408, 0
    %v1418 = vsel %vm367, %v1409, 0
    %v1421 = vsel %vm367, %v1410, 0
    %1423 = vmatprep.subr.bf16.mxu0 %v352
    %1424 = vmatpush1.bf16.msra.mxu0 %v351
    %1425 = vmatprep.subr.bf16.mxu0 %v354
    %1426 = vmatpush1.bf16.msra.mxu0 %v353
    %1427 = vmatprep.subr.bf16.mxu0 %v356
    %1428 = vmatpush1.bf16.msra.mxu0 %v355
    %1429 = vmatprep.subr.bf16.mxu0 %v358
    %1430 = vmatpush1.bf16.msra.mxu0 %v357
    %1431 = vmatprep.subr.bf16.mxu0 0
    %1432 = vmatpush1.bf16.msra.mxu0 0
    %1433 = vmatprep.subr.bf16.mxu0 0
    %1434 = vmatpush1.bf16.msra.mxu0 0
    %1435 = vmatprep.subr.bf16.mxu0 0
    %1436 = vmatpush1.bf16.msra.mxu0 0
    %1437 = vmatprep.subr.bf16.mxu0 0
    %1438 = vmatpush1.bf16.msra.mxu0 0
    %1439 = vmatprep.subr.bf16.mxu0 0
    %1440 = vmatpush1.bf16.msra.mxu0 0
    %1441 = vmatprep.subr.bf16.mxu0 0
    %1442 = vmatpush1.bf16.msra.mxu0 0
    %1443 = vmatprep.subr.bf16.mxu0 0
    %1444 = vmatpush1.bf16.msra.mxu0 0
    %1445 = vmatprep.subr.bf16.mxu0 0
    %1446 = vmatpush1.bf16.msra.mxu0 0
    %1447 = vmatprep.subr.bf16.mxu0 0
    %1448 = vmatpush1.bf16.msra.mxu0 0
    %1449 = vmatprep.subr.bf16.mxu0 0
    %1450 = vmatpush1.bf16.msra.mxu0 0
    %1451 = vmatprep.subr.bf16.mxu0 0
    %1452 = vmatpush1.bf16.msra.mxu0 0
    %1453 = vmatprep.subr.bf16.mxu0 0
    %1454 = vmatpush1.bf16.msra.mxu0 0
    %1455 = vmatprep.mubr.bf16.mxu0 0
    %1456 = vmatmul.mubr.bf16.gmra.mrb[0].mxu0 %v1412
    %v1457 = vpop.f32.mrb[0].mxu0
    %v1458 = vadd.f32 0.0, %v1457
    %v1459 = vpop.f32.mrb[0].mxu0
    %v1460 = vadd.f32 0.0, %v1459
    %v1461 = vpop.f32.mrb[0].mxu0
    %v1462 = vadd.f32 0.0, %v1461
    %v1463 = vpop.f32.mrb[0].mxu0
    %v1464 = vadd.f32 0.0, %v1463
    %1465 = vmatprep.mubr.bf16.mxu0 0
    %1466 = vmatmul.mubr.bf16.gmra.mrb[0].mxu0 %v1415
    %v1467 = vpop.f32.mrb[0].mxu0
    %v1468 = vadd.f32 0.0, %v1467
    %v1469 = vpop.f32.mrb[0].mxu0
    %v1470 = vadd.f32 0.0, %v1469
    %v1471 = vpop.f32.mrb[0].mxu0
    %v1472 = vadd.f32 0.0, %v1471
    %v1473 = vpop.f32.mrb[0].mxu0
    %v1474 = vadd.f32 0.0, %v1473
    %1475 = vmatprep.mubr.bf16.mxu0 0
    %1476 = vmatmul.mubr.bf16.gmra.mrb[0].mxu0 %v1418
    %v1477 = vpop.f32.mrb[0].mxu0
    %v1478 = vadd.f32 0.0, %v1477
    %v1479 = vpop.f32.mrb[0].mxu0
    %v1480 = vadd.f32 0.0, %v1479
    %v1481 = vpop.f32.mrb[0].mxu0
    %v1482 = vadd.f32 0.0, %v1481
    %v1483 = vpop.f32.mrb[0].mxu0
    %v1484 = vadd.f32 0.0, %v1483
    %1485 = vmatprep.mubr.bf16.mxu0 0
    %1486 = vmatmul.mubr.bf16.gmra.mrb[0].mxu0 %v1421
    %v1487 = vpop.f32.mrb[0].mxu0
    %v1488 = vadd.f32 0.0, %v1487
    %v1489 = vpop.f32.mrb[0].mxu0
    %v1490 = vadd.f32 0.0, %v1489
    %v1491 = vpop.f32.mrb[0].mxu0
    %v1492 = vadd.f32 0.0, %v1491
    %v1493 = vpop.f32.mrb[0].mxu0
    %v1494 = vadd.f32 0.0, %v1493
    %1495 = vdwg.mxu0
    %v1496 = vmax.f32 %v1143, %v1458
    %v1497 = vmax.f32 %v1144, %v1460
    %v1498 = vmax.f32 %v1145, %v1462
    %v1499 = vmax.f32 %v1146, %v1464
    %v1500 = vmax.f32 %v1147, %v1468
    %v1501 = vmax.f32 %v1148, %v1470
    %v1502 = vmax.f32 %v1149, %v1472
    %v1503 = vmax.f32 %v1150, %v1474
    %v1504 = vmax.f32 %v1151, %v1478
    %v1505 = vmax.f32 %v1152, %v1480
    %v1506 = vmax.f32 %v1153, %v1482
    %v1507 = vmax.f32 %v1154, %v1484
    %v1508 = vmax.f32 %v1155, %v1488
    %v1509 = vmax.f32 %v1156, %v1490
    %v1510 = vmax.f32 %v1157, %v1492
    %v1511 = vmax.f32 %v1158, %v1494
    %1512 = vset.pattern.permute.xlu0 20
    %1513 = vperm.xlu0 %1512, %v33
    %v1514 = vpop.permute.xlu0 %1513
    %1516 = vset.pattern.permute.xlu0 20
    %1517 = vperm.xlu0 %1516, %v34
    %v1518 = vpop.permute.xlu0 %1517
    %1520 = vset.pattern.permute.xlu0 20
    %1521 = vperm.xlu0 %1520, %v35
    %v1522 = vpop.permute.xlu0 %1521
    %1524 = vset.pattern.permute.xlu0 20
    %1525 = vperm.xlu0 %1524, %v36
    %v1526 = vpop.permute.xlu0 %1525
    %1528 = vset.pattern.permute.xlu0 20
    %1529 = vperm.xlu0 %1528, %v37
    %v1530 = vpop.permute.xlu0 %1529
    %1532 = vset.pattern.permute.xlu0 20
    %1533 = vperm.xlu0 %1532, %v38
    %v1534 = vpop.permute.xlu0 %1533
    %1536 = vset.pattern.permute.xlu0 20
    %1537 = vperm.xlu0 %1536, %v39
    %v1538 = vpop.permute.xlu0 %1537
    %1540 = vset.pattern.permute.xlu0 20
    %1541 = vperm.xlu0 %1540, %v40
    %v1542 = vpop.permute.xlu0 %1541
    %v1544 = vmul.f32 %v1514, %v84
    %v1545 = vmul.f32 %v1518, %v84
    %v1546 = vmul.f32 %v1522, %v84
    %v1547 = vmul.f32 %v1526, %v84
    %v1548 = vmul.f32 %v1530, %v84
    %v1549 = vmul.f32 %v1534, %v84
    %v1550 = vmul.f32 %v1538, %v84
    %v1551 = vmul.f32 %v1542, %v84
    %v1552 = vadd.f32 %v97, %v1544
    %v1553 = vadd.f32 %v97, %v1545
    %v1554 = vadd.f32 %v97, %v1546
    %v1555 = vadd.f32 %v97, %v1547
    %v1556 = vadd.f32 %v97, %v1548
    %v1557 = vadd.f32 %v97, %v1549
    %v1558 = vadd.f32 %v97, %v1550
    %v1559 = vadd.f32 %v97, %v1551
    %1560 = vset.pattern.permute.xlu0 21
    %1561 = vperm.xlu0 %1560, %v33
    %v1562 = vpop.permute.xlu0 %1561
    %1564 = vset.pattern.permute.xlu0 21
    %1565 = vperm.xlu0 %1564, %v34
    %v1566 = vpop.permute.xlu0 %1565
    %1568 = vset.pattern.permute.xlu0 21
    %1569 = vperm.xlu0 %1568, %v35
    %v1570 = vpop.permute.xlu0 %1569
    %1572 = vset.pattern.permute.xlu0 21
    %1573 = vperm.xlu0 %1572, %v36
    %v1574 = vpop.permute.xlu0 %1573
    %1576 = vset.pattern.permute.xlu0 21
    %1577 = vperm.xlu0 %1576, %v37
    %v1578 = vpop.permute.xlu0 %1577
    %1580 = vset.pattern.permute.xlu0 21
    %1581 = vperm.xlu0 %1580, %v38
    %v1582 = vpop.permute.xlu0 %1581
    %1584 = vset.pattern.permute.xlu0 21
    %1585 = vperm.xlu0 %1584, %v39
    %v1586 = vpop.permute.xlu0 %1585
    %1588 = vset.pattern.permute.xlu0 21
    %1589 = vperm.xlu0 %1588, %v40
    %v1590 = vpop.permute.xlu0 %1589
    %v1592 = vmul.f32 %v1562, %v142
    %v1593 = vmul.f32 %v1566, %v142
    %v1594 = vmul.f32 %v1570, %v142
    %v1595 = vmul.f32 %v1574, %v142
    %v1596 = vmul.f32 %v1578, %v142
    %v1597 = vmul.f32 %v1582, %v142
    %v1598 = vmul.f32 %v1586, %v142
    %v1599 = vmul.f32 %v1590, %v142
    %v1600 = vadd.f32 %v1552, %v1592
    %v1601 = vadd.f32 %v1553, %v1593
    %v1602 = vadd.f32 %v1554, %v1594
    %v1603 = vadd.f32 %v1555, %v1595
    %v1604 = vadd.f32 %v1556, %v1596
    %v1605 = vadd.f32 %v1557, %v1597
    %v1606 = vadd.f32 %v1558, %v1598
    %v1607 = vadd.f32 %v1559, %v1599
    %1608 = vset.pattern.permute.xlu0 22
    %1609 = vperm.xlu0 %1608, %v33
    %v1610 = vpop.permute.xlu0 %1609
    %1612 = vset.pattern.permute.xlu0 22
    %1613 = vperm.xlu0 %1612, %v34
    %v1614 = vpop.permute.xlu0 %1613
    %1616 = vset.pattern.permute.xlu0 22
    %1617 = vperm.xlu0 %1616, %v35
    %v1618 = vpop.permute.xlu0 %1617
    %1620 = vset.pattern.permute.xlu0 22
    %1621 = vperm.xlu0 %1620, %v36
    %v1622 = vpop.permute.xlu0 %1621
    %1624 = vset.pattern.permute.xlu0 22
    %1625 = vperm.xlu0 %1624, %v37
    %v1626 = vpop.permute.xlu0 %1625
    %1628 = vset.pattern.permute.xlu0 22
    %1629 = vperm.xlu0 %1628, %v38
    %v1630 = vpop.permute.xlu0 %1629
    %1632 = vset.pattern.permute.xlu0 22
    %1633 = vperm.xlu0 %1632, %v39
    %v1634 = vpop.permute.xlu0 %1633
    %1636 = vset.pattern.permute.xlu0 22
    %1637 = vperm.xlu0 %1636, %v40
    %v1638 = vpop.permute.xlu0 %1637
    %v1640 = vmul.f32 %v1610, %v194
    %v1641 = vmul.f32 %v1614, %v194
    %v1642 = vmul.f32 %v1618, %v194
    %v1643 = vmul.f32 %v1622, %v194
    %v1644 = vmul.f32 %v1626, %v194
    %v1645 = vmul.f32 %v1630, %v194
    %v1646 = vmul.f32 %v1634, %v194
    %v1647 = vmul.f32 %v1638, %v194
    %v1648 = vadd.f32 %v1600, %v1640
    %v1649 = vadd.f32 %v1601, %v1641
    %v1650 = vadd.f32 %v1602, %v1642
    %v1651 = vadd.f32 %v1603, %v1643
    %v1652 = vadd.f32 %v1604, %v1644
    %v1653 = vadd.f32 %v1605, %v1645
    %v1654 = vadd.f32 %v1606, %v1646
    %v1655 = vadd.f32 %v1607, %v1647
    %1656 = vset.pattern.permute.xlu0 23
    %1657 = vperm.xlu0 %1656, %v33
    %v1658 = vpop.permute.xlu0 %1657
    %1660 = vset.pattern.permute.xlu0 23
    %1661 = vperm.xlu0 %1660, %v34
    %v1662 = vpop.permute.xlu0 %1661
    %1664 = vset.pattern.permute.xlu0 23
    %1665 = vperm.xlu0 %1664, %v35
    %v1666 = vpop.permute.xlu0 %1665
    %1668 = vset.pattern.permute.xlu0 23
    %1669 = vperm.xlu0 %1668, %v36
    %v1670 = vpop.permute.xlu0 %1669
    %1672 = vset.pattern.permute.xlu0 23
    %1673 = vperm.xlu0 %1672, %v37
    %v1674 = vpop.permute.xlu0 %1673
    %1676 = vset.pattern.permute.xlu0 23
    %1677 = vperm.xlu0 %1676, %v38
    %v1678 = vpop.permute.xlu0 %1677
    %1680 = vset.pattern.permute.xlu0 23
    %1681 = vperm.xlu0 %1680, %v39
    %v1682 = vpop.permute.xlu0 %1681
    %1684 = vset.pattern.permute.xlu0 23
    %1685 = vperm.xlu0 %1684, %v40
    %v1686 = vpop.permute.xlu0 %1685
    %v1688 = vmul.f32 %v1658, %v246
    %v1689 = vmul.f32 %v1662, %v246
    %v1690 = vmul.f32 %v1666, %v246
    %v1691 = vmul.f32 %v1670, %v246
    %v1692 = vmul.f32 %v1674, %v246
    %v1693 = vmul.f32 %v1678, %v246
    %v1694 = vmul.f32 %v1682, %v246
    %v1695 = vmul.f32 %v1686, %v246
    %v1696 = vadd.f32 %v1648, %v1688
    %v1697 = vadd.f32 %v1649, %v1689
    %v1698 = vadd.f32 %v1650, %v1690
    %v1699 = vadd.f32 %v1651, %v1691
    %v1700 = vadd.f32 %v1652, %v1692
    %v1701 = vadd.f32 %v1653, %v1693
    %v1702 = vadd.f32 %v1654, %v1694
    %v1703 = vadd.f32 %v1655, %v1695
    %1704 = vset.pattern.permute.xlu0 24
    %1705 = vperm.xlu0 %1704, %v33
    %v1706 = vpop.permute.xlu0 %1705
    %1708 = vset.pattern.permute.xlu0 24
    %1709 = vperm.xlu0 %1708, %v34
    %v1710 = vpop.permute.xlu0 %1709
    %1712 = vset.pattern.permute.xlu0 24
    %1713 = vperm.xlu0 %1712, %v35
    %v1714 = vpop.permute.xlu0 %1713
    %1716 = vset.pattern.permute.xlu0 24
    %1717 = vperm.xlu0 %1716, %v36
    %v1718 = vpop.permute.xlu0 %1717
    %1720 = vset.pattern.permute.xlu0 24
    %1721 = vperm.xlu0 %1720, %v37
    %v1722 = vpop.permute.xlu0 %1721
    %1724 = vset.pattern.permute.xlu0 24
    %1725 = vperm.xlu0 %1724, %v38
    %v1726 = vpop.permute.xlu0 %1725
    %1728 = vset.pattern.permute.xlu0 24
    %1729 = vperm.xlu0 %1728, %v39
    %v1730 = vpop.permute.xlu0 %1729
    %1732 = vset.pattern.permute.xlu0 24
    %1733 = vperm.xlu0 %1732, %v40
    %v1734 = vpop.permute.xlu0 %1733
    %v1736 = vmul.f32 %v1706, %v298
    %v1737 = vmul.f32 %v1710, %v298
    %v1738 = vmul.f32 %v1714, %v298
    %v1739 = vmul.f32 %v1718, %v298
    %v1740 = vmul.f32 %v1722, %v298
    %v1741 = vmul.f32 %v1726, %v298
    %v1742 = vmul.f32 %v1730, %v298
    %v1743 = vmul.f32 %v1734, %v298
    %v1744 = vadd.f32 %v1696, %v1736
    %v1745 = vadd.f32 %v1697, %v1737
    %v1746 = vadd.f32 %v1698, %v1738
    %v1747 = vadd.f32 %v1699, %v1739
    %v1748 = vadd.f32 %v1700, %v1740
    %v1749 = vadd.f32 %v1701, %v1741
    %v1750 = vadd.f32 %v1702, %v1742
    %v1751 = vadd.f32 %v1703, %v1743
    %v1752 = vmax.f32 %v1744, 0.0
    %v1753 = vmax.f32 %v1745, 0.0
    %v1754 = vmax.f32 %v1746, 0.0
    %v1755 = vmax.f32 %v1747, 0.0
    %v1756 = vmax.f32 %v1748, 0.0
    %v1757 = vmax.f32 %v1749, 0.0
    %v1758 = vmax.f32 %v1750, 0.0
    %v1759 = vmax.f32 %v1751, 0.0
    %v1760 = vpack.c.bf16 %v1753, %v1752
    %v1761 = vpack.c.bf16 %v1755, %v1754
    %v1762 = vpack.c.bf16 %v1757, %v1756
    %v1763 = vpack.c.bf16 %v1759, %v1758
    %v1765 = vsel %vm367, %v1760, 0
    %v1768 = vsel %vm367, %v1761, 0
    %v1771 = vsel %vm367, %v1762, 0
    %v1774 = vsel %vm367, %v1763, 0
    %1776 = vmatprep.subr.bf16.mxu0 %v352
    %1777 = vmatpush1.bf16.msra.mxu0 %v351
    %1778 = vmatprep.subr.bf16.mxu0 %v354
    %1779 = vmatpush1.bf16.msra.mxu0 %v353
    %1780 = vmatprep.subr.bf16.mxu0 %v356
    %1781 = vmatpush1.bf16.msra.mxu0 %v355
    %1782 = vmatprep.subr.bf16.mxu0 %v358
    %1783 = vmatpush1.bf16.msra.mxu0 %v357
    %1784 = vmatprep.subr.bf16.mxu0 0
    %1785 = vmatpush1.bf16.msra.mxu0 0
    %1786 = vmatprep.subr.bf16.mxu0 0
    %1787 = vmatpush1.bf16.msra.mxu0 0
    %1788 = vmatprep.subr.bf16.mxu0 0
    %1789 = vmatpush1.bf16.msra.mxu0 0
    %1790 = vmatprep.subr.bf16.mxu0 0
    %1791 = vmatpush1.bf16.msra.mxu0 0
    %1792 = vmatprep.subr.bf16.mxu0 0
    %1793 = vmatpush1.bf16.msra.mxu0 0
    %1794 = vmatprep.subr.bf16.mxu0 0
    %1795 = vmatpush1.bf16.msra.mxu0 0
    %1796 = vmatprep.subr.bf16.mxu0 0
    %1797 = vmatpush1.bf16.msra.mxu0 0
    %1798 = vmatprep.subr.bf16.mxu0 0
    %1799 = vmatpush1.bf16.msra.mxu0 0
    %1800 = vmatprep.subr.bf16.mxu0 0
    %1801 = vmatpush1.bf16.msra.mxu0 0
    %1802 = vmatprep.subr.bf16.mxu0 0
    %1803 = vmatpush1.bf16.msra.mxu0 0
    %1804 = vmatprep.subr.bf16.mxu0 0
    %1805 = vmatpush1.bf16.msra.mxu0 0
    %1806 = vmatprep.subr.bf16.mxu0 0
    %1807 = vmatpush1.bf16.msra.mxu0 0
    %1808 = vmatprep.mubr.bf16.mxu0 0
    %1809 = vmatmul.mubr.bf16.gmra.mrb[0].mxu0 %v1765
    %v1810 = vpop.f32.mrb[0].mxu0
    %v1811 = vadd.f32 0.0, %v1810
    %v1812 = vpop.f32.mrb[0].mxu0
    %v1813 = vadd.f32 0.0, %v1812
    %v1814 = vpop.f32.mrb[0].mxu0
    %v1815 = vadd.f32 0.0, %v1814
    %v1816 = vpop.f32.mrb[0].mxu0
    %v1817 = vadd.f32 0.0, %v1816
    %1818 = vmatprep.mubr.bf16.mxu0 0
    %1819 = vmatmul.mubr.bf16.gmra.mrb[0].mxu0 %v1768
    %v1820 = vpop.f32.mrb[0].mxu0
    %v1821 = vadd.f32 0.0, %v1820
    %v1822 = vpop.f32.mrb[0].mxu0
    %v1823 = vadd.f32 0.0, %v1822
    %v1824 = vpop.f32.mrb[0].mxu0
    %v1825 = vadd.f32 0.0, %v1824
    %v1826 = vpop.f32.mrb[0].mxu0
    %v1827 = vadd.f32 0.0, %v1826
    %1828 = vmatprep.mubr.bf16.mxu0 0
    %1829 = vmatmul.mubr.bf16.gmra.mrb[0].mxu0 %v1771
    %v1830 = vpop.f32.mrb[0].mxu0
    %v1831 = vadd.f32 0.0, %v1830
    %v1832 = vpop.f32.mrb[0].mxu0
    %v1833 = vadd.f32 0.0, %v1832
    %v1834 = vpop.f32.mrb[0].mxu0
    %v1835 = vadd.f32 0.0, %v1834
    %v1836 = vpop.f32.mrb[0].mxu0
    %v1837 = vadd.f32 0.0, %v1836
    %1838 = vmatprep.mubr.bf16.mxu0 0
    %1839 = vmatmul.mubr.bf16.gmra.mrb[0].mxu0 %v1774
    %v1840 = vpop.f32.mrb[0].mxu0
    %v1841 = vadd.f32 0.0, %v1840
    %v1842 = vpop.f32.mrb[0].mxu0
    %v1843 = vadd.f32 0.0, %v1842
    %v1844 = vpop.f32.mrb[0].mxu0
    %v1845 = vadd.f32 0.0, %v1844
    %v1846 = vpop.f32.mrb[0].mxu0
    %v1847 = vadd.f32 0.0, %v1846
    %1848 = vdwg.mxu0
    %v1849 = vmax.f32 %v1496, %v1811
    %v1850 = vmax.f32 %v1497, %v1813
    %v1851 = vmax.f32 %v1498, %v1815
    %v1852 = vmax.f32 %v1499, %v1817
    %v1853 = vmax.f32 %v1500, %v1821
    %v1854 = vmax.f32 %v1501, %v1823
    %v1855 = vmax.f32 %v1502, %v1825
    %v1856 = vmax.f32 %v1503, %v1827
    %v1857 = vmax.f32 %v1504, %v1831
    %v1858 = vmax.f32 %v1505, %v1833
    %v1859 = vmax.f32 %v1506, %v1835
    %v1860 = vmax.f32 %v1507, %v1837
    %v1861 = vmax.f32 %v1508, %v1841
    %v1862 = vmax.f32 %v1509, %v1843
    %v1863 = vmax.f32 %v1510, %v1845
    %v1864 = vmax.f32 %v1511, %v1847
    %1865 = vset.pattern.permute.xlu0 25
    %1866 = vperm.xlu0 %1865, %v33
    %v1867 = vpop.permute.xlu0 %1866
    %1869 = vset.pattern.permute.xlu0 25
    %1870 = vperm.xlu0 %1869, %v34
    %v1871 = vpop.permute.xlu0 %1870
    %1873 = vset.pattern.permute.xlu0 25
    %1874 = vperm.xlu0 %1873, %v35
    %v1875 = vpop.permute.xlu0 %1874
    %1877 = vset.pattern.permute.xlu0 25
    %1878 = vperm.xlu0 %1877, %v36
    %v1879 = vpop.permute.xlu0 %1878
    %1881 = vset.pattern.permute.xlu0 25
    %1882 = vperm.xlu0 %1881, %v37
    %v1883 = vpop.permute.xlu0 %1882
    %1885 = vset.pattern.permute.xlu0 25
    %1886 = vperm.xlu0 %1885, %v38
    %v1887 = vpop.permute.xlu0 %1886
    %1889 = vset.pattern.permute.xlu0 25
    %1890 = vperm.xlu0 %1889, %v39
    %v1891 = vpop.permute.xlu0 %1890
    %1893 = vset.pattern.permute.xlu0 25
    %1894 = vperm.xlu0 %1893, %v40
    %v1895 = vpop.permute.xlu0 %1894
    %v1897 = vmul.f32 %v1867, %v84
    %v1898 = vmul.f32 %v1871, %v84
    %v1899 = vmul.f32 %v1875, %v84
    %v1900 = vmul.f32 %v1879, %v84
    %v1901 = vmul.f32 %v1883, %v84
    %v1902 = vmul.f32 %v1887, %v84
    %v1903 = vmul.f32 %v1891, %v84
    %v1904 = vmul.f32 %v1895, %v84
    %v1905 = vadd.f32 %v97, %v1897
    %v1906 = vadd.f32 %v97, %v1898
    %v1907 = vadd.f32 %v97, %v1899
    %v1908 = vadd.f32 %v97, %v1900
    %v1909 = vadd.f32 %v97, %v1901
    %v1910 = vadd.f32 %v97, %v1902
    %v1911 = vadd.f32 %v97, %v1903
    %v1912 = vadd.f32 %v97, %v1904
    %1913 = vset.pattern.permute.xlu0 26
    %1914 = vperm.xlu0 %1913, %v33
    %v1915 = vpop.permute.xlu0 %1914
    %1917 = vset.pattern.permute.xlu0 26
    %1918 = vperm.xlu0 %1917, %v34
    %v1919 = vpop.permute.xlu0 %1918
    %1921 = vset.pattern.permute.xlu0 26
    %1922 = vperm.xlu0 %1921, %v35
    %v1923 = vpop.permute.xlu0 %1922
    %1925 = vset.pattern.permute.xlu0 26
    %1926 = vperm.xlu0 %1925, %v36
    %v1927 = vpop.permute.xlu0 %1926
    %1929 = vset.pattern.permute.xlu0 26
    %1930 = vperm.xlu0 %1929, %v37
    %v1931 = vpop.permute.xlu0 %1930
    %1933 = vset.pattern.permute.xlu0 26
    %1934 = vperm.xlu0 %1933, %v38
    %v1935 = vpop.permute.xlu0 %1934
    %1937 = vset.pattern.permute.xlu0 26
    %1938 = vperm.xlu0 %1937, %v39
    %v1939 = vpop.permute.xlu0 %1938
    %1941 = vset.pattern.permute.xlu0 26
    %1942 = vperm.xlu0 %1941, %v40
    %v1943 = vpop.permute.xlu0 %1942
    %v1945 = vmul.f32 %v1915, %v142
    %v1946 = vmul.f32 %v1919, %v142
    %v1947 = vmul.f32 %v1923, %v142
    %v1948 = vmul.f32 %v1927, %v142
    %v1949 = vmul.f32 %v1931, %v142
    %v1950 = vmul.f32 %v1935, %v142
    %v1951 = vmul.f32 %v1939, %v142
    %v1952 = vmul.f32 %v1943, %v142
    %v1953 = vadd.f32 %v1905, %v1945
    %v1954 = vadd.f32 %v1906, %v1946
    %v1955 = vadd.f32 %v1907, %v1947
    %v1956 = vadd.f32 %v1908, %v1948
    %v1957 = vadd.f32 %v1909, %v1949
    %v1958 = vadd.f32 %v1910, %v1950
    %v1959 = vadd.f32 %v1911, %v1951
    %v1960 = vadd.f32 %v1912, %v1952
    %1961 = vset.pattern.permute.xlu0 27
    %1962 = vperm.xlu0 %1961, %v33
    %v1963 = vpop.permute.xlu0 %1962
    %1965 = vset.pattern.permute.xlu0 27
    %1966 = vperm.xlu0 %1965, %v34
    %v1967 = vpop.permute.xlu0 %1966
    %1969 = vset.pattern.permute.xlu0 27
    %1970 = vperm.xlu0 %1969, %v35
    %v1971 = vpop.permute.xlu0 %1970
    %1973 = vset.pattern.permute.xlu0 27
    %1974 = vperm.xlu0 %1973, %v36
    %v1975 = vpop.permute.xlu0 %1974
    %1977 = vset.pattern.permute.xlu0 27
    %1978 = vperm.xlu0 %1977, %v37
    %v1979 = vpop.permute.xlu0 %1978
    %1981 = vset.pattern.permute.xlu0 27
    %1982 = vperm.xlu0 %1981, %v38
    %v1983 = vpop.permute.xlu0 %1982
    %1985 = vset.pattern.permute.xlu0 27
    %1986 = vperm.xlu0 %1985, %v39
    %v1987 = vpop.permute.xlu0 %1986
    %1989 = vset.pattern.permute.xlu0 27
    %1990 = vperm.xlu0 %1989, %v40
    %v1991 = vpop.permute.xlu0 %1990
    %v1993 = vmul.f32 %v1963, %v194
    %v1994 = vmul.f32 %v1967, %v194
    %v1995 = vmul.f32 %v1971, %v194
    %v1996 = vmul.f32 %v1975, %v194
    %v1997 = vmul.f32 %v1979, %v194
    %v1998 = vmul.f32 %v1983, %v194
    %v1999 = vmul.f32 %v1987, %v194
    %v2000 = vmul.f32 %v1991, %v194
    %v2001 = vadd.f32 %v1953, %v1993
    %v2002 = vadd.f32 %v1954, %v1994
    %v2003 = vadd.f32 %v1955, %v1995
    %v2004 = vadd.f32 %v1956, %v1996
    %v2005 = vadd.f32 %v1957, %v1997
    %v2006 = vadd.f32 %v1958, %v1998
    %v2007 = vadd.f32 %v1959, %v1999
    %v2008 = vadd.f32 %v1960, %v2000
    %2009 = vset.pattern.permute.xlu0 28
    %2010 = vperm.xlu0 %2009, %v33
    %v2011 = vpop.permute.xlu0 %2010
    %2013 = vset.pattern.permute.xlu0 28
    %2014 = vperm.xlu0 %2013, %v34
    %v2015 = vpop.permute.xlu0 %2014
    %2017 = vset.pattern.permute.xlu0 28
    %2018 = vperm.xlu0 %2017, %v35
    %v2019 = vpop.permute.xlu0 %2018
    %2021 = vset.pattern.permute.xlu0 28
    %2022 = vperm.xlu0 %2021, %v36
    %v2023 = vpop.permute.xlu0 %2022
    %2025 = vset.pattern.permute.xlu0 28
    %2026 = vperm.xlu0 %2025, %v37
    %v2027 = vpop.permute.xlu0 %2026
    %2029 = vset.pattern.permute.xlu0 28
    %2030 = vperm.xlu0 %2029, %v38
    %v2031 = vpop.permute.xlu0 %2030
    %2033 = vset.pattern.permute.xlu0 28
    %2034 = vperm.xlu0 %2033, %v39
    %v2035 = vpop.permute.xlu0 %2034
    %2037 = vset.pattern.permute.xlu0 28
    %2038 = vperm.xlu0 %2037, %v40
    %v2039 = vpop.permute.xlu0 %2038
    %v2041 = vmul.f32 %v2011, %v246
    %v2042 = vmul.f32 %v2015, %v246
    %v2043 = vmul.f32 %v2019, %v246
    %v2044 = vmul.f32 %v2023, %v246
    %v2045 = vmul.f32 %v2027, %v246
    %v2046 = vmul.f32 %v2031, %v246
    %v2047 = vmul.f32 %v2035, %v246
    %v2048 = vmul.f32 %v2039, %v246
    %v2049 = vadd.f32 %v2001, %v2041
    %v2050 = vadd.f32 %v2002, %v2042
    %v2051 = vadd.f32 %v2003, %v2043
    %v2052 = vadd.f32 %v2004, %v2044
    %v2053 = vadd.f32 %v2005, %v2045
    %v2054 = vadd.f32 %v2006, %v2046
    %v2055 = vadd.f32 %v2007, %v2047
    %v2056 = vadd.f32 %v2008, %v2048
    %2057 = vset.pattern.permute.xlu0 29
    %2058 = vperm.xlu0 %2057, %v33
    %v2059 = vpop.permute.xlu0 %2058
    %2061 = vset.pattern.permute.xlu0 29
    %2062 = vperm.xlu0 %2061, %v34
    %v2063 = vpop.permute.xlu0 %2062
    %2065 = vset.pattern.permute.xlu0 29
    %2066 = vperm.xlu0 %2065, %v35
    %v2067 = vpop.permute.xlu0 %2066
    %2069 = vset.pattern.permute.xlu0 29
    %2070 = vperm.xlu0 %2069, %v36
    %v2071 = vpop.permute.xlu0 %2070
    %2073 = vset.pattern.permute.xlu0 29
    %2074 = vperm.xlu0 %2073, %v37
    %v2075 = vpop.permute.xlu0 %2074
    %2077 = vset.pattern.permute.xlu0 29
    %2078 = vperm.xlu0 %2077, %v38
    %v2079 = vpop.permute.xlu0 %2078
    %2081 = vset.pattern.permute.xlu0 29
    %2082 = vperm.xlu0 %2081, %v39
    %v2083 = vpop.permute.xlu0 %2082
    %2085 = vset.pattern.permute.xlu0 29
    %2086 = vperm.xlu0 %2085, %v40
    %v2087 = vpop.permute.xlu0 %2086
    %v2089 = vmul.f32 %v2059, %v298
    %v2090 = vmul.f32 %v2063, %v298
    %v2091 = vmul.f32 %v2067, %v298
    %v2092 = vmul.f32 %v2071, %v298
    %v2093 = vmul.f32 %v2075, %v298
    %v2094 = vmul.f32 %v2079, %v298
    %v2095 = vmul.f32 %v2083, %v298
    %v2096 = vmul.f32 %v2087, %v298
    %v2097 = vadd.f32 %v2049, %v2089
    %v2098 = vadd.f32 %v2050, %v2090
    %v2099 = vadd.f32 %v2051, %v2091
    %v2100 = vadd.f32 %v2052, %v2092
    %v2101 = vadd.f32 %v2053, %v2093
    %v2102 = vadd.f32 %v2054, %v2094
    %v2103 = vadd.f32 %v2055, %v2095
    %v2104 = vadd.f32 %v2056, %v2096
    %v2105 = vmax.f32 %v2097, 0.0
    %v2106 = vmax.f32 %v2098, 0.0
    %v2107 = vmax.f32 %v2099, 0.0
    %v2108 = vmax.f32 %v2100, 0.0
    %v2109 = vmax.f32 %v2101, 0.0
    %v2110 = vmax.f32 %v2102, 0.0
    %v2111 = vmax.f32 %v2103, 0.0
    %v2112 = vmax.f32 %v2104, 0.0
    %v2113 = vpack.c.bf16 %v2106, %v2105
    %v2114 = vpack.c.bf16 %v2108, %v2107
    %v2115 = vpack.c.bf16 %v2110, %v2109
    %v2116 = vpack.c.bf16 %v2112, %v2111
    %v2118 = vsel %vm367, %v2113, 0
    %v2121 = vsel %vm367, %v2114, 0
    %v2124 = vsel %vm367, %v2115, 0
    %v2127 = vsel %vm367, %v2116, 0
    %2129 = vmatprep.subr.bf16.mxu0 %v352
    %2130 = vmatpush1.bf16.msra.mxu0 %v351
    %2131 = vmatprep.subr.bf16.mxu0 %v354
    %2132 = vmatpush1.bf16.msra.mxu0 %v353
    %2133 = vmatprep.subr.bf16.mxu0 %v356
    %2134 = vmatpush1.bf16.msra.mxu0 %v355
    %2135 = vmatprep.subr.bf16.mxu0 %v358
    %2136 = vmatpush1.bf16.msra.mxu0 %v357
    %2137 = vmatprep.subr.bf16.mxu0 0
    %2138 = vmatpush1.bf16.msra.mxu0 0
    %2139 = vmatprep.subr.bf16.mxu0 0
    %2140 = vmatpush1.bf16.msra.mxu0 0
    %2141 = vmatprep.subr.bf16.mxu0 0
    %2142 = vmatpush1.bf16.msra.mxu0 0
    %2143 = vmatprep.subr.bf16.mxu0 0
    %2144 = vmatpush1.bf16.msra.mxu0 0
    %2145 = vmatprep.subr.bf16.mxu0 0
    %2146 = vmatpush1.bf16.msra.mxu0 0
    %2147 = vmatprep.subr.bf16.mxu0 0
    %2148 = vmatpush1.bf16.msra.mxu0 0
    %2149 = vmatprep.subr.bf16.mxu0 0
    %2150 = vmatpush1.bf16.msra.mxu0 0
    %2151 = vmatprep.subr.bf16.mxu0 0
    %2152 = vmatpush1.bf16.msra.mxu0 0
    %2153 = vmatprep.subr.bf16.mxu0 0
    %2154 = vmatpush1.bf16.msra.mxu0 0
    %2155 = vmatprep.subr.bf16.mxu0 0
    %2156 = vmatpush1.bf16.msra.mxu0 0
    %2157 = vmatprep.subr.bf16.mxu0 0
    %2158 = vmatpush1.bf16.msra.mxu0 0
    %2159 = vmatprep.subr.bf16.mxu0 0
    %2160 = vmatpush1.bf16.msra.mxu0 0
    %2161 = vmatprep.mubr.bf16.mxu0 0
    %2162 = vmatmul.mubr.bf16.gmra.mrb[0].mxu0 %v2118
    %v2163 = vpop.f32.mrb[0].mxu0
    %v2164 = vadd.f32 0.0, %v2163
    %v2165 = vpop.f32.mrb[0].mxu0
    %v2166 = vadd.f32 0.0, %v2165
    %v2167 = vpop.f32.mrb[0].mxu0
    %v2168 = vadd.f32 0.0, %v2167
    %v2169 = vpop.f32.mrb[0].mxu0
    %v2170 = vadd.f32 0.0, %v2169
    %2171 = vmatprep.mubr.bf16.mxu0 0
    %2172 = vmatmul.mubr.bf16.gmra.mrb[0].mxu0 %v2121
    %v2173 = vpop.f32.mrb[0].mxu0
    %v2174 = vadd.f32 0.0, %v2173
    %v2175 = vpop.f32.mrb[0].mxu0
    %v2176 = vadd.f32 0.0, %v2175
    %v2177 = vpop.f32.mrb[0].mxu0
    %v2178 = vadd.f32 0.0, %v2177
    %v2179 = vpop.f32.mrb[0].mxu0
    %v2180 = vadd.f32 0.0, %v2179
    %2181 = vmatprep.mubr.bf16.mxu0 0
    %2182 = vmatmul.mubr.bf16.gmra.mrb[0].mxu0 %v2124
    %v2183 = vpop.f32.mrb[0].mxu0
    %v2184 = vadd.f32 0.0, %v2183
    %v2185 = vpop.f32.mrb[0].mxu0
    %v2186 = vadd.f32 0.0, %v2185
    %v2187 = vpop.f32.mrb[0].mxu0
    %v2188 = vadd.f32 0.0, %v2187
    %v2189 = vpop.f32.mrb[0].mxu0
    %v2190 = vadd.f32 0.0, %v2189
    %2191 = vmatprep.mubr.bf16.mxu0 0
    %2192 = vmatmul.mubr.bf16.gmra.mrb[0].mxu0 %v2127
    %v2193 = vpop.f32.mrb[0].mxu0
    %v2194 = vadd.f32 0.0, %v2193
    %v2195 = vpop.f32.mrb[0].mxu0
    %v2196 = vadd.f32 0.0, %v2195
    %v2197 = vpop.f32.mrb[0].mxu0
    %v2198 = vadd.f32 0.0, %v2197
    %v2199 = vpop.f32.mrb[0].mxu0
    %v2200 = vadd.f32 0.0, %v2199
    %2201 = vdwg.mxu0
    %v2202 = vmax.f32 %v1849, %v2164
    %v2203 = vmax.f32 %v1850, %v2166
    %v2204 = vmax.f32 %v1851, %v2168
    %v2205 = vmax.f32 %v1852, %v2170
    %v2206 = vmax.f32 %v1853, %v2174
    %v2207 = vmax.f32 %v1854, %v2176
    %v2208 = vmax.f32 %v1855, %v2178
    %v2209 = vmax.f32 %v1856, %v2180
    %v2210 = vmax.f32 %v1857, %v2184
    %v2211 = vmax.f32 %v1858, %v2186
    %v2212 = vmax.f32 %v1859, %v2188
    %v2213 = vmax.f32 %v1860, %v2190
    %v2214 = vmax.f32 %v1861, %v2194
    %v2215 = vmax.f32 %v1862, %v2196
    %v2216 = vmax.f32 %v1863, %v2198
    %v2217 = vmax.f32 %v1864, %v2200
    %2218 = vset.pattern.permute.xlu0 30
    %2219 = vperm.xlu0 %2218, %v33
    %v2220 = vpop.permute.xlu0 %2219
    %2222 = vset.pattern.permute.xlu0 30
    %2223 = vperm.xlu0 %2222, %v34
    %v2224 = vpop.permute.xlu0 %2223
    %2226 = vset.pattern.permute.xlu0 30
    %2227 = vperm.xlu0 %2226, %v35
    %v2228 = vpop.permute.xlu0 %2227
    %2230 = vset.pattern.permute.xlu0 30
    %2231 = vperm.xlu0 %2230, %v36
    %v2232 = vpop.permute.xlu0 %2231
    %2234 = vset.pattern.permute.xlu0 30
    %2235 = vperm.xlu0 %2234, %v37
    %v2236 = vpop.permute.xlu0 %2235
    %2238 = vset.pattern.permute.xlu0 30
    %2239 = vperm.xlu0 %2238, %v38
    %v2240 = vpop.permute.xlu0 %2239
    %2242 = vset.pattern.permute.xlu0 30
    %2243 = vperm.xlu0 %2242, %v39
    %v2244 = vpop.permute.xlu0 %2243
    %2246 = vset.pattern.permute.xlu0 30
    %2247 = vperm.xlu0 %2246, %v40
    %v2248 = vpop.permute.xlu0 %2247
    %v2250 = vmul.f32 %v2220, %v84
    %v2251 = vmul.f32 %v2224, %v84
    %v2252 = vmul.f32 %v2228, %v84
    %v2253 = vmul.f32 %v2232, %v84
    %v2254 = vmul.f32 %v2236, %v84
    %v2255 = vmul.f32 %v2240, %v84
    %v2256 = vmul.f32 %v2244, %v84
    %v2257 = vmul.f32 %v2248, %v84
    %v2258 = vadd.f32 %v97, %v2250
    %v2259 = vadd.f32 %v97, %v2251
    %v2260 = vadd.f32 %v97, %v2252
    %v2261 = vadd.f32 %v97, %v2253
    %v2262 = vadd.f32 %v97, %v2254
    %v2263 = vadd.f32 %v97, %v2255
    %v2264 = vadd.f32 %v97, %v2256
    %v2265 = vadd.f32 %v97, %v2257
    %2266 = vset.pattern.permute.xlu0 31
    %2267 = vperm.xlu0 %2266, %v33
    %v2268 = vpop.permute.xlu0 %2267
    %2270 = vset.pattern.permute.xlu0 31
    %2271 = vperm.xlu0 %2270, %v34
    %v2272 = vpop.permute.xlu0 %2271
    %2274 = vset.pattern.permute.xlu0 31
    %2275 = vperm.xlu0 %2274, %v35
    %v2276 = vpop.permute.xlu0 %2275
    %2278 = vset.pattern.permute.xlu0 31
    %2279 = vperm.xlu0 %2278, %v36
    %v2280 = vpop.permute.xlu0 %2279
    %2282 = vset.pattern.permute.xlu0 31
    %2283 = vperm.xlu0 %2282, %v37
    %v2284 = vpop.permute.xlu0 %2283
    %2286 = vset.pattern.permute.xlu0 31
    %2287 = vperm.xlu0 %2286, %v38
    %v2288 = vpop.permute.xlu0 %2287
    %2290 = vset.pattern.permute.xlu0 31
    %2291 = vperm.xlu0 %2290, %v39
    %v2292 = vpop.permute.xlu0 %2291
    %2294 = vset.pattern.permute.xlu0 31
    %2295 = vperm.xlu0 %2294, %v40
    %v2296 = vpop.permute.xlu0 %2295
    %v2298 = vmul.f32 %v2268, %v142
    %v2299 = vmul.f32 %v2272, %v142
    %v2300 = vmul.f32 %v2276, %v142
    %v2301 = vmul.f32 %v2280, %v142
    %v2302 = vmul.f32 %v2284, %v142
    %v2303 = vmul.f32 %v2288, %v142
    %v2304 = vmul.f32 %v2292, %v142
    %v2305 = vmul.f32 %v2296, %v142
    %v2306 = vadd.f32 %v2258, %v2298
    %v2307 = vadd.f32 %v2259, %v2299
    %v2308 = vadd.f32 %v2260, %v2300
    %v2309 = vadd.f32 %v2261, %v2301
    %v2310 = vadd.f32 %v2262, %v2302
    %v2311 = vadd.f32 %v2263, %v2303
    %v2312 = vadd.f32 %v2264, %v2304
    %v2313 = vadd.f32 %v2265, %v2305
    %2314 = vset.pattern.permute.xlu0 32
    %2315 = vperm.xlu0 %2314, %v33
    %v2316 = vpop.permute.xlu0 %2315
    %2318 = vset.pattern.permute.xlu0 32
    %2319 = vperm.xlu0 %2318, %v34
    %v2320 = vpop.permute.xlu0 %2319
    %2322 = vset.pattern.permute.xlu0 32
    %2323 = vperm.xlu0 %2322, %v35
    %v2324 = vpop.permute.xlu0 %2323
    %2326 = vset.pattern.permute.xlu0 32
    %2327 = vperm.xlu0 %2326, %v36
    %v2328 = vpop.permute.xlu0 %2327
    %2330 = vset.pattern.permute.xlu0 32
    %2331 = vperm.xlu0 %2330, %v37
    %v2332 = vpop.permute.xlu0 %2331
    %2334 = vset.pattern.permute.xlu0 32
    %2335 = vperm.xlu0 %2334, %v38
    %v2336 = vpop.permute.xlu0 %2335
    %2338 = vset.pattern.permute.xlu0 32
    %2339 = vperm.xlu0 %2338, %v39
    %v2340 = vpop.permute.xlu0 %2339
    %2342 = vset.pattern.permute.xlu0 32
    %2343 = vperm.xlu0 %2342, %v40
    %v2344 = vpop.permute.xlu0 %2343
    %v2346 = vmul.f32 %v2316, %v194
    %v2347 = vmul.f32 %v2320, %v194
    %v2348 = vmul.f32 %v2324, %v194
    %v2349 = vmul.f32 %v2328, %v194
    %v2350 = vmul.f32 %v2332, %v194
    %v2351 = vmul.f32 %v2336, %v194
    %v2352 = vmul.f32 %v2340, %v194
    %v2353 = vmul.f32 %v2344, %v194
    %v2354 = vadd.f32 %v2306, %v2346
    %v2355 = vadd.f32 %v2307, %v2347
    %v2356 = vadd.f32 %v2308, %v2348
    %v2357 = vadd.f32 %v2309, %v2349
    %v2358 = vadd.f32 %v2310, %v2350
    %v2359 = vadd.f32 %v2311, %v2351
    %v2360 = vadd.f32 %v2312, %v2352
    %v2361 = vadd.f32 %v2313, %v2353
    %2362 = vset.pattern.permute.xlu0 33
    %2363 = vperm.xlu0 %2362, %v33
    %v2364 = vpop.permute.xlu0 %2363
    %2366 = vset.pattern.permute.xlu0 33
    %2367 = vperm.xlu0 %2366, %v34
    %v2368 = vpop.permute.xlu0 %2367
    %2370 = vset.pattern.permute.xlu0 33
    %2371 = vperm.xlu0 %2370, %v35
    %v2372 = vpop.permute.xlu0 %2371
    %2374 = vset.pattern.permute.xlu0 33
    %2375 = vperm.xlu0 %2374, %v36
    %v2376 = vpop.permute.xlu0 %2375
    %2378 = vset.pattern.permute.xlu0 33
    %2379 = vperm.xlu0 %2378, %v37
    %v2380 = vpop.permute.xlu0 %2379
    %2382 = vset.pattern.permute.xlu0 33
    %2383 = vperm.xlu0 %2382, %v38
    %v2384 = vpop.permute.xlu0 %2383
    %2386 = vset.pattern.permute.xlu0 33
    %2387 = vperm.xlu0 %2386, %v39
    %v2388 = vpop.permute.xlu0 %2387
    %2390 = vset.pattern.permute.xlu0 33
    %2391 = vperm.xlu0 %2390, %v40
    %v2392 = vpop.permute.xlu0 %2391
    %v2394 = vmul.f32 %v2364, %v246
    %v2395 = vmul.f32 %v2368, %v246
    %v2396 = vmul.f32 %v2372, %v246
    %v2397 = vmul.f32 %v2376, %v246
    %v2398 = vmul.f32 %v2380, %v246
    %v2399 = vmul.f32 %v2384, %v246
    %v2400 = vmul.f32 %v2388, %v246
    %v2401 = vmul.f32 %v2392, %v246
    %v2402 = vadd.f32 %v2354, %v2394
    %v2403 = vadd.f32 %v2355, %v2395
    %v2404 = vadd.f32 %v2356, %v2396
    %v2405 = vadd.f32 %v2357, %v2397
    %v2406 = vadd.f32 %v2358, %v2398
    %v2407 = vadd.f32 %v2359, %v2399
    %v2408 = vadd.f32 %v2360, %v2400
    %v2409 = vadd.f32 %v2361, %v2401
    %2410 = vset.pattern.permute.xlu0 34
    %2411 = vperm.xlu0 %2410, %v33
    %v2412 = vpop.permute.xlu0 %2411
    %2414 = vset.pattern.permute.xlu0 34
    %2415 = vperm.xlu0 %2414, %v34
    %v2416 = vpop.permute.xlu0 %2415
    %2418 = vset.pattern.permute.xlu0 34
    %2419 = vperm.xlu0 %2418, %v35
    %v2420 = vpop.permute.xlu0 %2419
    %2422 = vset.pattern.permute.xlu0 34
    %2423 = vperm.xlu0 %2422, %v36
    %v2424 = vpop.permute.xlu0 %2423
    %2426 = vset.pattern.permute.xlu0 34
    %2427 = vperm.xlu0 %2426, %v37
    %v2428 = vpop.permute.xlu0 %2427
    %2430 = vset.pattern.permute.xlu0 34
    %2431 = vperm.xlu0 %2430, %v38
    %v2432 = vpop.permute.xlu0 %2431
    %2434 = vset.pattern.permute.xlu0 34
    %2435 = vperm.xlu0 %2434, %v39
    %v2436 = vpop.permute.xlu0 %2435
    %2438 = vset.pattern.permute.xlu0 34
    %2439 = vperm.xlu0 %2438, %v40
    %v2440 = vpop.permute.xlu0 %2439
    %v2442 = vmul.f32 %v2412, %v298
    %v2443 = vmul.f32 %v2416, %v298
    %v2444 = vmul.f32 %v2420, %v298
    %v2445 = vmul.f32 %v2424, %v298
    %v2446 = vmul.f32 %v2428, %v298
    %v2447 = vmul.f32 %v2432, %v298
    %v2448 = vmul.f32 %v2436, %v298
    %v2449 = vmul.f32 %v2440, %v298
    %v2450 = vadd.f32 %v2402, %v2442
    %v2451 = vadd.f32 %v2403, %v2443
    %v2452 = vadd.f32 %v2404, %v2444
    %v2453 = vadd.f32 %v2405, %v2445
    %v2454 = vadd.f32 %v2406, %v2446
    %v2455 = vadd.f32 %v2407, %v2447
    %v2456 = vadd.f32 %v2408, %v2448
    %v2457 = vadd.f32 %v2409, %v2449
    %v2458 = vmax.f32 %v2450, 0.0
    %v2459 = vmax.f32 %v2451, 0.0
    %v2460 = vmax.f32 %v2452, 0.0
    %v2461 = vmax.f32 %v2453, 0.0
    %v2462 = vmax.f32 %v2454, 0.0
    %v2463 = vmax.f32 %v2455, 0.0
    %v2464 = vmax.f32 %v2456, 0.0
    %v2465 = vmax.f32 %v2457, 0.0
    %v2466 = vpack.c.bf16 %v2459, %v2458
    %v2467 = vpack.c.bf16 %v2461, %v2460
    %v2468 = vpack.c.bf16 %v2463, %v2462
    %v2469 = vpack.c.bf16 %v2465, %v2464
    %v2471 = vsel %vm367, %v2466, 0
    %v2474 = vsel %vm367, %v2467, 0
    %v2477 = vsel %vm367, %v2468, 0
    %v2480 = vsel %vm367, %v2469, 0
    %2482 = vmatprep.subr.bf16.mxu0 %v352
    %2483 = vmatpush1.bf16.msra.mxu0 %v351
    %2484 = vmatprep.subr.bf16.mxu0 %v354
    %2485 = vmatpush1.bf16.msra.mxu0 %v353
    %2486 = vmatprep.subr.bf16.mxu0 %v356
    %2487 = vmatpush1.bf16.msra.mxu0 %v355
    %2488 = vmatprep.subr.bf16.mxu0 %v358
    %2489 = vmatpush1.bf16.msra.mxu0 %v357
    %2490 = vmatprep.subr.bf16.mxu0 0
    %2491 = vmatpush1.bf16.msra.mxu0 0
    %2492 = vmatprep.subr.bf16.mxu0 0
    %2493 = vmatpush1.bf16.msra.mxu0 0
    %2494 = vmatprep.subr.bf16.mxu0 0
    %2495 = vmatpush1.bf16.msra.mxu0 0
    %2496 = vmatprep.subr.bf16.mxu0 0
    %2497 = vmatpush1.bf16.msra.mxu0 0
    %2498 = vmatprep.subr.bf16.mxu0 0
    %2499 = vmatpush1.bf16.msra.mxu0 0
    %2500 = vmatprep.subr.bf16.mxu0 0
    %2501 = vmatpush1.bf16.msra.mxu0 0
    %2502 = vmatprep.subr.bf16.mxu0 0
    %2503 = vmatpush1.bf16.msra.mxu0 0
    %2504 = vmatprep.subr.bf16.mxu0 0
    %2505 = vmatpush1.bf16.msra.mxu0 0
    %2506 = vmatprep.subr.bf16.mxu0 0
    %2507 = vmatpush1.bf16.msra.mxu0 0
    %2508 = vmatprep.subr.bf16.mxu0 0
    %2509 = vmatpush1.bf16.msra.mxu0 0
    %2510 = vmatprep.subr.bf16.mxu0 0
    %2511 = vmatpush1.bf16.msra.mxu0 0
    %2512 = vmatprep.subr.bf16.mxu0 0
    %2513 = vmatpush1.bf16.msra.mxu0 0
    %2514 = vmatprep.mubr.bf16.mxu0 0
    %2515 = vmatmul.mubr.bf16.gmra.mrb[0].mxu0 %v2471
    %v2516 = vpop.f32.mrb[0].mxu0
    %v2517 = vadd.f32 0.0, %v2516
    %v2518 = vpop.f32.mrb[0].mxu0
    %v2519 = vadd.f32 0.0, %v2518
    %v2520 = vpop.f32.mrb[0].mxu0
    %v2521 = vadd.f32 0.0, %v2520
    %v2522 = vpop.f32.mrb[0].mxu0
    %v2523 = vadd.f32 0.0, %v2522
    %2524 = vmatprep.mubr.bf16.mxu0 0
    %2525 = vmatmul.mubr.bf16.gmra.mrb[0].mxu0 %v2474
    %v2526 = vpop.f32.mrb[0].mxu0
    %v2527 = vadd.f32 0.0, %v2526
    %v2528 = vpop.f32.mrb[0].mxu0
    %v2529 = vadd.f32 0.0, %v2528
    %v2530 = vpop.f32.mrb[0].mxu0
    %v2531 = vadd.f32 0.0, %v2530
    %v2532 = vpop.f32.mrb[0].mxu0
    %v2533 = vadd.f32 0.0, %v2532
    %2534 = vmatprep.mubr.bf16.mxu0 0
    %2535 = vmatmul.mubr.bf16.gmra.mrb[0].mxu0 %v2477
    %v2536 = vpop.f32.mrb[0].mxu0
    %v2537 = vadd.f32 0.0, %v2536
    %v2538 = vpop.f32.mrb[0].mxu0
    %v2539 = vadd.f32 0.0, %v2538
    %v2540 = vpop.f32.mrb[0].mxu0
    %v2541 = vadd.f32 0.0, %v2540
    %v2542 = vpop.f32.mrb[0].mxu0
    %v2543 = vadd.f32 0.0, %v2542
    %2544 = vmatprep.mubr.bf16.mxu0 0
    %2545 = vmatmul.mubr.bf16.gmra.mrb[0].mxu0 %v2480
    %v2546 = vpop.f32.mrb[0].mxu0
    %v2547 = vadd.f32 0.0, %v2546
    %v2548 = vpop.f32.mrb[0].mxu0
    %v2549 = vadd.f32 0.0, %v2548
    %v2550 = vpop.f32.mrb[0].mxu0
    %v2551 = vadd.f32 0.0, %v2550
    %v2552 = vpop.f32.mrb[0].mxu0
    %v2553 = vadd.f32 0.0, %v2552
    %2554 = vdwg.mxu0
    %v2555 = vmax.f32 %v2202, %v2517
    %v2556 = vmax.f32 %v2203, %v2519
    %v2557 = vmax.f32 %v2204, %v2521
    %v2558 = vmax.f32 %v2205, %v2523
    %v2559 = vmax.f32 %v2206, %v2527
    %v2560 = vmax.f32 %v2207, %v2529
    %v2561 = vmax.f32 %v2208, %v2531
    %v2562 = vmax.f32 %v2209, %v2533
    %v2563 = vmax.f32 %v2210, %v2537
    %v2564 = vmax.f32 %v2211, %v2539
    %v2565 = vmax.f32 %v2212, %v2541
    %v2566 = vmax.f32 %v2213, %v2543
    %v2567 = vmax.f32 %v2214, %v2547
    %v2568 = vmax.f32 %v2215, %v2549
    %v2569 = vmax.f32 %v2216, %v2551
    %v2570 = vmax.f32 %v2217, %v2553
    %2571 = vset.pattern.permute.xlu0 35
    %2572 = vperm.xlu0 %2571, %v33
    %v2573 = vpop.permute.xlu0 %2572
    %2575 = vset.pattern.permute.xlu0 35
    %2576 = vperm.xlu0 %2575, %v34
    %v2577 = vpop.permute.xlu0 %2576
    %2579 = vset.pattern.permute.xlu0 35
    %2580 = vperm.xlu0 %2579, %v35
    %v2581 = vpop.permute.xlu0 %2580
    %2583 = vset.pattern.permute.xlu0 35
    %2584 = vperm.xlu0 %2583, %v36
    %v2585 = vpop.permute.xlu0 %2584
    %2587 = vset.pattern.permute.xlu0 35
    %2588 = vperm.xlu0 %2587, %v37
    %v2589 = vpop.permute.xlu0 %2588
    %2591 = vset.pattern.permute.xlu0 35
    %2592 = vperm.xlu0 %2591, %v38
    %v2593 = vpop.permute.xlu0 %2592
    %2595 = vset.pattern.permute.xlu0 35
    %2596 = vperm.xlu0 %2595, %v39
    %v2597 = vpop.permute.xlu0 %2596
    %2599 = vset.pattern.permute.xlu0 35
    %2600 = vperm.xlu0 %2599, %v40
    %v2601 = vpop.permute.xlu0 %2600
    %v2603 = vmul.f32 %v2573, %v84
    %v2604 = vmul.f32 %v2577, %v84
    %v2605 = vmul.f32 %v2581, %v84
    %v2606 = vmul.f32 %v2585, %v84
    %v2607 = vmul.f32 %v2589, %v84
    %v2608 = vmul.f32 %v2593, %v84
    %v2609 = vmul.f32 %v2597, %v84
    %v2610 = vmul.f32 %v2601, %v84
    %v2611 = vadd.f32 %v97, %v2603
    %v2612 = vadd.f32 %v97, %v2604
    %v2613 = vadd.f32 %v97, %v2605
    %v2614 = vadd.f32 %v97, %v2606
    %v2615 = vadd.f32 %v97, %v2607
    %v2616 = vadd.f32 %v97, %v2608
    %v2617 = vadd.f32 %v97, %v2609
    %v2618 = vadd.f32 %v97, %v2610
    %2619 = vset.pattern.permute.xlu0 36
    %2620 = vperm.xlu0 %2619, %v33
    %v2621 = vpop.permute.xlu0 %2620
    %2623 = vset.pattern.permute.xlu0 36
    %2624 = vperm.xlu0 %2623, %v34
    %v2625 = vpop.permute.xlu0 %2624
    %2627 = vset.pattern.permute.xlu0 36
    %2628 = vperm.xlu0 %2627, %v35
    %v2629 = vpop.permute.xlu0 %2628
    %2631 = vset.pattern.permute.xlu0 36
    %2632 = vperm.xlu0 %2631, %v36
    %v2633 = vpop.permute.xlu0 %2632
    %2635 = vset.pattern.permute.xlu0 36
    %2636 = vperm.xlu0 %2635, %v37
    %v2637 = vpop.permute.xlu0 %2636
    %2639 = vset.pattern.permute.xlu0 36
    %2640 = vperm.xlu0 %2639, %v38
    %v2641 = vpop.permute.xlu0 %2640
    %2643 = vset.pattern.permute.xlu0 36
    %2644 = vperm.xlu0 %2643, %v39
    %v2645 = vpop.permute.xlu0 %2644
    %2647 = vset.pattern.permute.xlu0 36
    %2648 = vperm.xlu0 %2647, %v40
    %v2649 = vpop.permute.xlu0 %2648
    %v2651 = vmul.f32 %v2621, %v142
    %v2652 = vmul.f32 %v2625, %v142
    %v2653 = vmul.f32 %v2629, %v142
    %v2654 = vmul.f32 %v2633, %v142
    %v2655 = vmul.f32 %v2637, %v142
    %v2656 = vmul.f32 %v2641, %v142
    %v2657 = vmul.f32 %v2645, %v142
    %v2658 = vmul.f32 %v2649, %v142
    %v2659 = vadd.f32 %v2611, %v2651
    %v2660 = vadd.f32 %v2612, %v2652
    %v2661 = vadd.f32 %v2613, %v2653
    %v2662 = vadd.f32 %v2614, %v2654
    %v2663 = vadd.f32 %v2615, %v2655
    %v2664 = vadd.f32 %v2616, %v2656
    %v2665 = vadd.f32 %v2617, %v2657
    %v2666 = vadd.f32 %v2618, %v2658
    %2667 = vset.pattern.permute.xlu0 37
    %2668 = vperm.xlu0 %2667, %v33
    %v2669 = vpop.permute.xlu0 %2668
    %2671 = vset.pattern.permute.xlu0 37
    %2672 = vperm.xlu0 %2671, %v34
    %v2673 = vpop.permute.xlu0 %2672
    %2675 = vset.pattern.permute.xlu0 37
    %2676 = vperm.xlu0 %2675, %v35
    %v2677 = vpop.permute.xlu0 %2676
    %2679 = vset.pattern.permute.xlu0 37
    %2680 = vperm.xlu0 %2679, %v36
    %v2681 = vpop.permute.xlu0 %2680
    %2683 = vset.pattern.permute.xlu0 37
    %2684 = vperm.xlu0 %2683, %v37
    %v2685 = vpop.permute.xlu0 %2684
    %2687 = vset.pattern.permute.xlu0 37
    %2688 = vperm.xlu0 %2687, %v38
    %v2689 = vpop.permute.xlu0 %2688
    %2691 = vset.pattern.permute.xlu0 37
    %2692 = vperm.xlu0 %2691, %v39
    %v2693 = vpop.permute.xlu0 %2692
    %2695 = vset.pattern.permute.xlu0 37
    %2696 = vperm.xlu0 %2695, %v40
    %v2697 = vpop.permute.xlu0 %2696
    %v2699 = vmul.f32 %v2669, %v194
    %v2700 = vmul.f32 %v2673, %v194
    %v2701 = vmul.f32 %v2677, %v194
    %v2702 = vmul.f32 %v2681, %v194
    %v2703 = vmul.f32 %v2685, %v194
    %v2704 = vmul.f32 %v2689, %v194
    %v2705 = vmul.f32 %v2693, %v194
    %v2706 = vmul.f32 %v2697, %v194
    %v2707 = vadd.f32 %v2659, %v2699
    %v2708 = vadd.f32 %v2660, %v2700
    %v2709 = vadd.f32 %v2661, %v2701
    %v2710 = vadd.f32 %v2662, %v2702
    %v2711 = vadd.f32 %v2663, %v2703
    %v2712 = vadd.f32 %v2664, %v2704
    %v2713 = vadd.f32 %v2665, %v2705
    %v2714 = vadd.f32 %v2666, %v2706
    %2715 = vset.pattern.permute.xlu0 38
    %2716 = vperm.xlu0 %2715, %v33
    %v2717 = vpop.permute.xlu0 %2716
    %2719 = vset.pattern.permute.xlu0 38
    %2720 = vperm.xlu0 %2719, %v34
    %v2721 = vpop.permute.xlu0 %2720
    %2723 = vset.pattern.permute.xlu0 38
    %2724 = vperm.xlu0 %2723, %v35
    %v2725 = vpop.permute.xlu0 %2724
    %2727 = vset.pattern.permute.xlu0 38
    %2728 = vperm.xlu0 %2727, %v36
    %v2729 = vpop.permute.xlu0 %2728
    %2731 = vset.pattern.permute.xlu0 38
    %2732 = vperm.xlu0 %2731, %v37
    %v2733 = vpop.permute.xlu0 %2732
    %2735 = vset.pattern.permute.xlu0 38
    %2736 = vperm.xlu0 %2735, %v38
    %v2737 = vpop.permute.xlu0 %2736
    %2739 = vset.pattern.permute.xlu0 38
    %2740 = vperm.xlu0 %2739, %v39
    %v2741 = vpop.permute.xlu0 %2740
    %2743 = vset.pattern.permute.xlu0 38
    %2744 = vperm.xlu0 %2743, %v40
    %v2745 = vpop.permute.xlu0 %2744
    %v2747 = vmul.f32 %v2717, %v246
    %v2748 = vmul.f32 %v2721, %v246
    %v2749 = vmul.f32 %v2725, %v246
    %v2750 = vmul.f32 %v2729, %v246
    %v2751 = vmul.f32 %v2733, %v246
    %v2752 = vmul.f32 %v2737, %v246
    %v2753 = vmul.f32 %v2741, %v246
    %v2754 = vmul.f32 %v2745, %v246
    %v2755 = vadd.f32 %v2707, %v2747
    %v2756 = vadd.f32 %v2708, %v2748
    %v2757 = vadd.f32 %v2709, %v2749
    %v2758 = vadd.f32 %v2710, %v2750
    %v2759 = vadd.f32 %v2711, %v2751
    %v2760 = vadd.f32 %v2712, %v2752
    %v2761 = vadd.f32 %v2713, %v2753
    %v2762 = vadd.f32 %v2714, %v2754
    %2763 = vset.pattern.permute.xlu0 39
    %2764 = vperm.xlu0 %2763, %v33
    %v2765 = vpop.permute.xlu0 %2764
    %2767 = vset.pattern.permute.xlu0 39
    %2768 = vperm.xlu0 %2767, %v34
    %v2769 = vpop.permute.xlu0 %2768
    %2771 = vset.pattern.permute.xlu0 39
    %2772 = vperm.xlu0 %2771, %v35
    %v2773 = vpop.permute.xlu0 %2772
    %2775 = vset.pattern.permute.xlu0 39
    %2776 = vperm.xlu0 %2775, %v36
    %v2777 = vpop.permute.xlu0 %2776
    %2779 = vset.pattern.permute.xlu0 39
    %2780 = vperm.xlu0 %2779, %v37
    %v2781 = vpop.permute.xlu0 %2780
    %2783 = vset.pattern.permute.xlu0 39
    %2784 = vperm.xlu0 %2783, %v38
    %v2785 = vpop.permute.xlu0 %2784
    %2787 = vset.pattern.permute.xlu0 39
    %2788 = vperm.xlu0 %2787, %v39
    %v2789 = vpop.permute.xlu0 %2788
    %2791 = vset.pattern.permute.xlu0 39
    %2792 = vperm.xlu0 %2791, %v40
    %v2793 = vpop.permute.xlu0 %2792
    %v2795 = vmul.f32 %v2765, %v298
    %v2796 = vmul.f32 %v2769, %v298
    %v2797 = vmul.f32 %v2773, %v298
    %v2798 = vmul.f32 %v2777, %v298
    %v2799 = vmul.f32 %v2781, %v298
    %v2800 = vmul.f32 %v2785, %v298
    %v2801 = vmul.f32 %v2789, %v298
    %v2802 = vmul.f32 %v2793, %v298
    %v2803 = vadd.f32 %v2755, %v2795
    %v2804 = vadd.f32 %v2756, %v2796
    %v2805 = vadd.f32 %v2757, %v2797
    %v2806 = vadd.f32 %v2758, %v2798
    %v2807 = vadd.f32 %v2759, %v2799
    %v2808 = vadd.f32 %v2760, %v2800
    %v2809 = vadd.f32 %v2761, %v2801
    %v2810 = vadd.f32 %v2762, %v2802
    %v2811 = vmax.f32 %v2803, 0.0
    %v2812 = vmax.f32 %v2804, 0.0
    %v2813 = vmax.f32 %v2805, 0.0
    %v2814 = vmax.f32 %v2806, 0.0
    %v2815 = vmax.f32 %v2807, 0.0
    %v2816 = vmax.f32 %v2808, 0.0
    %v2817 = vmax.f32 %v2809, 0.0
    %v2818 = vmax.f32 %v2810, 0.0
    %v2819 = vpack.c.bf16 %v2812, %v2811
    %v2820 = vpack.c.bf16 %v2814, %v2813
    %v2821 = vpack.c.bf16 %v2816, %v2815
    %v2822 = vpack.c.bf16 %v2818, %v2817
    %v2824 = vsel %vm367, %v2819, 0
    %v2827 = vsel %vm367, %v2820, 0
    %v2830 = vsel %vm367, %v2821, 0
    %v2833 = vsel %vm367, %v2822, 0
    %2835 = vmatprep.subr.bf16.mxu0 %v352
    %2836 = vmatpush1.bf16.msra.mxu0 %v351
    %2837 = vmatprep.subr.bf16.mxu0 %v354
    %2838 = vmatpush1.bf16.msra.mxu0 %v353
    %2839 = vmatprep.subr.bf16.mxu0 %v356
    %2840 = vmatpush1.bf16.msra.mxu0 %v355
    %2841 = vmatprep.subr.bf16.mxu0 %v358
    %2842 = vmatpush1.bf16.msra.mxu0 %v357
    %2843 = vmatprep.subr.bf16.mxu0 0
    %2844 = vmatpush1.bf16.msra.mxu0 0
    %2845 = vmatprep.subr.bf16.mxu0 0
    %2846 = vmatpush1.bf16.msra.mxu0 0
    %2847 = vmatprep.subr.bf16.mxu0 0
    %2848 = vmatpush1.bf16.msra.mxu0 0
    %2849 = vmatprep.subr.bf16.mxu0 0
    %2850 = vmatpush1.bf16.msra.mxu0 0
    %2851 = vmatprep.subr.bf16.mxu0 0
    %2852 = vmatpush1.bf16.msra.mxu0 0
    %2853 = vmatprep.subr.bf16.mxu0 0
    %2854 = vmatpush1.bf16.msra.mxu0 0
    %2855 = vmatprep.subr.bf16.mxu0 0
    %2856 = vmatpush1.bf16.msra.mxu0 0
    %2857 = vmatprep.subr.bf16.mxu0 0
    %2858 = vmatpush1.bf16.msra.mxu0 0
    %2859 = vmatprep.subr.bf16.mxu0 0
    %2860 = vmatpush1.bf16.msra.mxu0 0
    %2861 = vmatprep.subr.bf16.mxu0 0
    %2862 = vmatpush1.bf16.msra.mxu0 0
    %2863 = vmatprep.subr.bf16.mxu0 0
    %2864 = vmatpush1.bf16.msra.mxu0 0
    %2865 = vmatprep.subr.bf16.mxu0 0
    %2866 = vmatpush1.bf16.msra.mxu0 0
    %2867 = vmatprep.mubr.bf16.mxu0 0
    %2868 = vmatmul.mubr.bf16.gmra.mrb[0].mxu0 %v2824
    %v2869 = vpop.f32.mrb[0].mxu0
    %v2870 = vadd.f32 0.0, %v2869
    %v2871 = vpop.f32.mrb[0].mxu0
    %v2872 = vadd.f32 0.0, %v2871
    %v2873 = vpop.f32.mrb[0].mxu0
    %v2874 = vadd.f32 0.0, %v2873
    %v2875 = vpop.f32.mrb[0].mxu0
    %v2876 = vadd.f32 0.0, %v2875
    %2877 = vmatprep.mubr.bf16.mxu0 0
    %2878 = vmatmul.mubr.bf16.gmra.mrb[0].mxu0 %v2827
    %v2879 = vpop.f32.mrb[0].mxu0
    %v2880 = vadd.f32 0.0, %v2879
    %v2881 = vpop.f32.mrb[0].mxu0
    %v2882 = vadd.f32 0.0, %v2881
    %v2883 = vpop.f32.mrb[0].mxu0
    %v2884 = vadd.f32 0.0, %v2883
    %v2885 = vpop.f32.mrb[0].mxu0
    %v2886 = vadd.f32 0.0, %v2885
    %2887 = vmatprep.mubr.bf16.mxu0 0
    %2888 = vmatmul.mubr.bf16.gmra.mrb[0].mxu0 %v2830
    %v2889 = vpop.f32.mrb[0].mxu0
    %v2890 = vadd.f32 0.0, %v2889
    %v2891 = vpop.f32.mrb[0].mxu0
    %v2892 = vadd.f32 0.0, %v2891
    %v2893 = vpop.f32.mrb[0].mxu0
    %v2894 = vadd.f32 0.0, %v2893
    %v2895 = vpop.f32.mrb[0].mxu0
    %v2896 = vadd.f32 0.0, %v2895
    %2897 = vmatprep.mubr.bf16.mxu0 0
    %2898 = vmatmul.mubr.bf16.gmra.mrb[0].mxu0 %v2833
    %v2899 = vpop.f32.mrb[0].mxu0
    %v2900 = vadd.f32 0.0, %v2899
    %v2901 = vpop.f32.mrb[0].mxu0
    %v2902 = vadd.f32 0.0, %v2901
    %v2903 = vpop.f32.mrb[0].mxu0
    %v2904 = vadd.f32 0.0, %v2903
    %v2905 = vpop.f32.mrb[0].mxu0
    %v2906 = vadd.f32 0.0, %v2905
    %2907 = vdwg.mxu0
    %v2908 = vmax.f32 %v2555, %v2870
    %v2909 = vmax.f32 %v2556, %v2872
    %v2910 = vmax.f32 %v2557, %v2874
    %v2911 = vmax.f32 %v2558, %v2876
    %v2912 = vmax.f32 %v2559, %v2880
    %v2913 = vmax.f32 %v2560, %v2882
    %v2914 = vmax.f32 %v2561, %v2884
    %v2915 = vmax.f32 %v2562, %v2886
    %v2916 = vmax.f32 %v2563, %v2890
    %v2917 = vmax.f32 %v2564, %v2892
    %v2918 = vmax.f32 %v2565, %v2894
    %v2919 = vmax.f32 %v2566, %v2896
    %v2920 = vmax.f32 %v2567, %v2900
    %v2921 = vmax.f32 %v2568, %v2902
    %v2922 = vmax.f32 %v2569, %v2904
    %v2923 = vmax.f32 %v2570, %v2906
    %v2925 = vlaneseq
    %v2926 = vshrl.u32 %v2925, 7
    %v2927 = vsub.s32 0, %v2926
    %v2928 = vrot.slane %v32, %v2927
    %v2929 = vlaneseq
    %v2930 = vshrl.u32 %v2929, 7
    %v2931 = vsub.s32 1, %v2930
    %v2932 = vrot.slane %v32, %v2931
    %v2935 = vadd.f32 %v2908, %v2928
    %v2936 = vadd.f32 %v2909, %v2932
    %v2937 = vadd.f32 %v2910, %v2928
    %v2938 = vadd.f32 %v2911, %v2932
    %v2939 = vadd.f32 %v2912, %v2928
    %v2940 = vadd.f32 %v2913, %v2932
    %v2941 = vadd.f32 %v2914, %v2928
    %v2942 = vadd.f32 %v2915, %v2932
    %v2943 = vadd.f32 %v2916, %v2928
    %v2944 = vadd.f32 %v2917, %v2932
    %v2945 = vadd.f32 %v2918, %v2928
    %v2946 = vadd.f32 %v2919, %v2932
    %v2947 = vadd.f32 %v2920, %v2928
    %v2948 = vadd.f32 %v2921, %v2932
    %v2949 = vadd.f32 %v2922, %v2928
    %v2950 = vadd.f32 %v2923, %v2932
    %s2951 = smul.u32 0, 2
    %s2952 = smul.addr %s2951, 8
    %s2953 = scalar_lea.vmem [#allocation2], %s2952
    %2954 = vst [vmem:[%s2953] sm:$0xff] %v2935
    %2955 = vst [vmem:[%s2953 + $0x8] sm:$0xff] %v2936
    %2956 = vst [vmem:[%s2953 + $0x10] sm:$0xff] %v2937
    %2957 = vst [vmem:[%s2953 + $0x18] sm:$0xff] %v2938
    %2958 = vst [vmem:[%s2953 + $0x20] sm:$0xff] %v2939
    %2959 = vst [vmem:[%s2953 + $0x28] sm:$0xff] %v2940
    %2960 = vst [vmem:[%s2953 + $0x30] sm:$0xff] %v2941
    %2961 = vst [vmem:[%s2953 + $0x38] sm:$0xff] %v2942
    %2962 = vst [vmem:[%s2953 + $0x40] sm:$0xff] %v2943
    %2963 = vst [vmem:[%s2953 + $0x48] sm:$0xff] %v2944
    %2964 = vst [vmem:[%s2953 + $0x50] sm:$0xff] %v2945
    %2965 = vst [vmem:[%s2953 + $0x58] sm:$0xff] %v2946
    %2966 = vst [vmem:[%s2953 + $0x60] sm:$0xff] %v2947
    %2967 = vst [vmem:[%s2953 + $0x68] sm:$0xff] %v2948
    %2968 = vst [vmem:[%s2953 + $0x70] sm:$0xff] %v2949
    %2969 = vst [vmem:[%s2953 + $0x78] sm:$0xff] %v2950
    // Predicated region
    $region22: #{tpu_custom_call.1} parent=1 // pred_check
      _
    $region23: #{tpu_custom_call.1} parent=1 // pred_check_branch
      %2971 = sbr.rel (0) target = $region25
    $region24: #{tpu_custom_call.1} parent=1 // pred_region
      %s2973 = ssub.s32 2048, 2048
      %2974 = vsyncadd [#allocation3], %s2973
      %s2975 = sshll.u32 [#allocation2], 4
      %s2976 = int_to_ptr.vmem [resolvable:$true] %s2975
      %2981 = dma.vmem_to_hbm [thread:$0]  %s2976, 2048, %s5, [#allocation3], 256, 256, 16
    $region25: #{tpu_custom_call.1} parent=1 // pred_fallthru
      _
    // Predicated region
    $region26: #{tpu_custom_call.1} parent=1 // pred_check
      _
    $region27: #{tpu_custom_call.1} parent=1 // pred_check_branch
      %2983 = sbr.rel (0) target = $region29
    $region28: #{tpu_custom_call.1} parent=1 // pred_region
      %2984 = dma.done [#allocation3], 2048
    $region29: #{tpu_custom_call.1} parent=1 // pred_fallthru
      _
    %2985 = vsyncpa [#allocation3], 1

</llo_original>
